<compile_context>
chip_gen: v7x
topology: tpu7x:2x2x1
jax: 0.10.0
libtpu: 0.0.40
codegen_flags: <defaults>
</compile_context>

<pallas_src>
import functools

import jax
import jax.numpy as jnp
from jax.experimental import pallas as pl
from jax.experimental.pallas import tpu as pltpu


def policy_mlp_kernel(x_ref, w1_ref, b1_ref, w2_ref, b2_ref, w3t_ref, b3_ref,
                      o_ref):
    x = x_ref[...]                      # (bb, S) f32
    w1 = w1_ref[...]                    # (S, H) f32
    # fc1 + ReLU: S is tiny (3) -> S rank-1 broadcast MACs on the VPU instead
    # of a degenerate K=3 MXU matmul (no K padding, no bf16 cast for x).
    h = b1_ref[...] + x[:, 0:1] * w1[0:1, :]
    for k in range(1, w1.shape[0]):
        h = h + x[:, k:k + 1] * w1[k:k + 1, :]
    h = jnp.maximum(h, 0.0)
    # fc2 + ReLU: the only real matmul -> bf16 MXU operands, f32 accumulate,
    # f32 epilogue (v5e's VPU has no bf16).
    h = jnp.dot(h.astype(jnp.bfloat16), w2_ref[...],
                preferred_element_type=jnp.float32)
    h = jnp.maximum(h + b2_ref[...], 0.0)
    # fc3 + tanh: action_dim is tiny (1) -> per-column VPU mul + XLU lane
    # reduce instead of a 128x zero-padded MXU matmul; epilogue only on the
    # valid column(s).
    w3t = w3t_ref[...]                  # (A, H) f32, w3 stored transposed
    cols = [jnp.sum(h * w3t[a:a + 1, :], axis=1, keepdims=True)
            for a in range(w3t.shape[0])]
    h3 = cols[0] if len(cols) == 1 else jnp.concatenate(cols, axis=1)
    o_ref[...] = jnp.tanh(h3 + b3_ref[...])


def _round_up(n, m):
    return ((n + m - 1) // m) * m


@functools.partial(jax.jit, static_argnames=("block_b",))
def policy_forward(x, w1, b1, w2, b2, w3t, b3, *, block_b=512):
    """x: (B, state_dim) f32.  Weights must come from pack_params()."""
    B, state_dim = x.shape
    action_dim = w3t.shape[0]

    bb = block_b
    if B < bb:
        # >=2 tiles when possible (so v7x can place one per TensorCore),
        # rounded to a multiple of 16 for bf16 sublane packing of the fc2
        # operand.
        bb = max(16, _round_up(pl.cdiv(B, 2), 16))
    Bp = _round_up(B, bb)
    xin = x if Bp == B else jnp.pad(x, ((0, Bp - B), (0, 0)))

    # Grid-invariant full blocks: weights/biases DMA'd once, VMEM-resident.
    const = lambda a: pl.BlockSpec(a.shape, lambda i: (0,) * a.ndim)

    out = pl.pallas_call(
        policy_mlp_kernel,
        out_shape=jax.ShapeDtypeStruct((Bp, action_dim), jnp.float32),
        grid_spec=pl.GridSpec(
            grid=(Bp // bb,),
            in_specs=[
                pl.BlockSpec((bb, state_dim), lambda i: (i, 0)),   # x tile
                const(w1), const(b1),
                const(w2), const(b2),
                const(w3t), const(b3),
            ],
            out_specs=pl.BlockSpec((bb, action_dim), lambda i: (i, 0)),
        ),
        compiler_params=pltpu.CompilerParams(
            dimension_semantics=("parallel",)),
    )(xin, w1, b1, w2, b2, w3t, b3)
    return out if Bp == B else out[:B]


def pack_params(w1, b1, w2, b2, w3, b3):
    """One-time weight prep, hoisted out of the per-call path."""
    return (jnp.asarray(w1, jnp.float32),                    # (S, H) f32
            jnp.asarray(b1, jnp.float32).reshape(1, -1),     # (1, H) f32
            jnp.asarray(w2, jnp.bfloat16),                   # (H, H) bf16
            jnp.asarray(b2, jnp.float32).reshape(1, -1),     # (1, H) f32
            jnp.asarray(w3, jnp.float32).T,                  # (A, H) f32
            jnp.asarray(b3, jnp.float32).reshape(1, -1))     # (1, A) f32


def init_params(key, state_dim, action_dim, hidden_dim):
    """Deterministic init mimicking nn.Linear's uniform(-1/sqrt(fan_in), +)."""
    ks = jax.random.split(key, 6)

    def lin(kw, kb, fan_in, fan_out):
        bound = 1.0 / jnp.sqrt(fan_in)
        w = jax.random.uniform(kw, (fan_in, fan_out), jnp.float32, -bound, bound)
        b = jax.random.uniform(kb, (1, fan_out), jnp.float32, -bound, bound)
        return w, b

    w1, b1 = lin(ks[0], ks[1], state_dim, hidden_dim)
    w2, b2 = lin(ks[2], ks[3], hidden_dim, hidden_dim)
    w3, b3 = lin(ks[4], ks[5], hidden_dim, action_dim)
    return w1, b1, w2, b2, w3, b3


def reference_forward_mixed(x, w1, b1, w2, b2, w3, b3):
    """Pure-JAX reference matching the kernel's math (f32 fc1/fc3, bf16 fc2)."""
    hi = jax.lax.Precision.HIGHEST
    h = jnp.maximum(jnp.dot(x, w1, precision=hi) + b1, 0.0)
    h = jnp.dot(h.astype(jnp.bfloat16), w2.astype(jnp.bfloat16),
                preferred_element_type=jnp.float32)
    h = jnp.maximum(h + b2, 0.0)
    return jnp.tanh(jnp.dot(h, w3, precision=hi) + b3)


def reference_forward_f32(x, w1, b1, w2, b2, w3, b3):
    hi = jax.lax.Precision.HIGHEST
    h = jnp.maximum(jnp.dot(x, w1, precision=hi) + b1, 0.0)
    h = jnp.maximum(jnp.dot(h, w2, precision=hi) + b2, 0.0)
    return jnp.tanh(jnp.dot(h, w3, precision=hi) + b3)


if __name__ == "__main__":
    # Pendulum-v1: state_dim=3, action_dim=1; hidden_dim default 128.
    state_dim, action_dim, hidden_dim = 3, 1, 128

    key = jax.random.PRNGKey(0)
    kx, kx2, kp = jax.random.split(key, 3)
    raw = init_params(kp, state_dim, action_dim, hidden_dim)
    packed = pack_params(*raw)   # once, outside the per-call path

    # Main path: batch divisible by block_b -> grid=(2,), no wrapper pad/slice.
    x = jax.random.normal(kx, (1024, state_dim), jnp.float32)
    out = jax.block_until_ready(policy_forward(x, *packed))
    assert out.shape == (1024, action_dim)

    ref_m = reference_forward_mixed(x, *raw)
    assert jnp.allclose(out, ref_m, atol=2e-3, rtol=2e-3), (
        float(jnp.max(jnp.abs(out - ref_m))))
    ref_f = reference_forward_f32(x, *raw)
    assert jnp.allclose(out, ref_f, atol=5e-2, rtol=5e-2), (
        float(jnp.max(jnp.abs(out - ref_f))))

    # Small ragged batch: exercises the pad + small-block (2-tile) path.
    x2 = jax.random.normal(kx2, (37, state_dim), jnp.float32)
    out2 = jax.block_until_ready(policy_forward(x2, *packed))
    assert out2.shape == (37, action_dim)
    ref2 = reference_forward_f32(x2, *raw)
    assert jnp.allclose(out2, ref2, atol=5e-2, rtol=5e-2), (
        float(jnp.max(jnp.abs(out2 - ref2))))

    print("KERNEL_OK")
</pallas_src>

<mosaic_0001>
module attributes {stable_mosaic.version = 11 : i64} {
  func.func @policy_mlp_kernel(%arg0: i32, %arg1: memref<512x3xf32, #tpu.memory_space<vmem>>, %arg2: memref<3x128xf32, #tpu.memory_space<vmem>>, %arg3: memref<1x128xf32, #tpu.memory_space<vmem>>, %arg4: memref<128x128xbf16, #tpu.memory_space<vmem>>, %arg5: memref<1x128xf32, #tpu.memory_space<vmem>>, %arg6: memref<1x128xf32, #tpu.memory_space<vmem>>, %arg7: memref<1x1xf32, #tpu.memory_space<vmem>>, %arg8: memref<512x1xf32, #tpu.memory_space<vmem>>) attributes {dimension_semantics = [#tpu.dimension_semantics<parallel>], iteration_bounds = array<i64: 2>, scalar_prefetch = 0 : i64, scratch_operands = 0 : i64, tpu.core_type = #tpu.core_type<tc>, window_params = [{transform_indices = @transform_0, window_bounds = array<i64: 512, 3>}, {pipeline_mode = #tpu.pipeline_mode<synchronous>, transform_indices = @transform_1, window_bounds = array<i64: 3, 128>}, {pipeline_mode = #tpu.pipeline_mode<synchronous>, transform_indices = @transform_2, window_bounds = array<i64: 1, 128>}, {pipeline_mode = #tpu.pipeline_mode<synchronous>, transform_indices = @transform_3, window_bounds = array<i64: 128, 128>}, {pipeline_mode = #tpu.pipeline_mode<synchronous>, transform_indices = @transform_4, window_bounds = array<i64: 1, 128>}, {pipeline_mode = #tpu.pipeline_mode<synchronous>, transform_indices = @transform_5, window_bounds = array<i64: 1, 128>}, {pipeline_mode = #tpu.pipeline_mode<synchronous>, transform_indices = @transform_6, window_bounds = array<i64: 1, 1>}, {transform_indices = @transform_7, window_bounds = array<i64: 512, 1>}]} {
    %c0 = arith.constant 0 : index
    %c0_0 = arith.constant 0 : index
    %0 = vector.load %arg1[%c0, %c0_0] : memref<512x3xf32, #tpu.memory_space<vmem>>, vector<512x3xf32>
    %c0_1 = arith.constant 0 : index
    %c0_2 = arith.constant 0 : index
    %1 = vector.load %arg2[%c0_1, %c0_2] : memref<3x128xf32, #tpu.memory_space<vmem>>, vector<3x128xf32>
    %c0_3 = arith.constant 0 : index
    %c0_4 = arith.constant 0 : index
    %2 = vector.load %arg3[%c0_3, %c0_4] : memref<1x128xf32, #tpu.memory_space<vmem>>, vector<1x128xf32>
    %3 = vector.extract_strided_slice %0 {offsets = [0, 0], sizes = [512, 1], strides = [1, 1]} : vector<512x3xf32> to vector<512x1xf32>
    %4 = vector.extract_strided_slice %1 {offsets = [0, 0], sizes = [1, 128], strides = [1, 1]} : vector<3x128xf32> to vector<1x128xf32>
    %5 = vector.broadcast %3 : vector<512x1xf32> to vector<512x128xf32>
    %6 = vector.broadcast %4 : vector<1x128xf32> to vector<512x128xf32>
    %7 = arith.mulf %5, %6 : vector<512x128xf32>
    %8 = vector.broadcast %2 : vector<1x128xf32> to vector<512x128xf32>
    %9 = arith.addf %8, %7 : vector<512x128xf32>
    %10 = vector.extract_strided_slice %0 {offsets = [0, 1], sizes = [512, 1], strides = [1, 1]} : vector<512x3xf32> to vector<512x1xf32>
    %11 = vector.extract_strided_slice %1 {offsets = [1, 0], sizes = [1, 128], strides = [1, 1]} : vector<3x128xf32> to vector<1x128xf32>
    %12 = vector.broadcast %10 : vector<512x1xf32> to vector<512x128xf32>
    %13 = vector.broadcast %11 : vector<1x128xf32> to vector<512x128xf32>
    %14 = arith.mulf %12, %13 : vector<512x128xf32>
    %15 = arith.addf %9, %14 : vector<512x128xf32>
    %16 = vector.extract_strided_slice %0 {offsets = [0, 2], sizes = [512, 1], strides = [1, 1]} : vector<512x3xf32> to vector<512x1xf32>
    %17 = vector.extract_strided_slice %1 {offsets = [2, 0], sizes = [1, 128], strides = [1, 1]} : vector<3x128xf32> to vector<1x128xf32>
    %18 = vector.broadcast %16 : vector<512x1xf32> to vector<512x128xf32>
    %19 = vector.broadcast %17 : vector<1x128xf32> to vector<512x128xf32>
    %20 = arith.mulf %18, %19 : vector<512x128xf32>
    %21 = arith.addf %15, %20 : vector<512x128xf32>
    %cst = arith.constant 0.000000e+00 : f32
    %22 = vector.broadcast %cst : f32 to vector<512x128xf32>
    %23 = arith.maximumf %21, %22 : vector<512x128xf32>
    %24 = arith.truncf %23 : vector<512x128xf32> to vector<512x128xbf16>
    %c0_5 = arith.constant 0 : index
    %c0_6 = arith.constant 0 : index
    %25 = vector.load %arg4[%c0_5, %c0_6] : memref<128x128xbf16, #tpu.memory_space<vmem>>, vector<128x128xbf16>
    %cst_7 = arith.constant dense<0.000000e+00> : vector<512x128xf32>
    %26 = tpu.matmul %24, %25, %cst_7 {dimension_numbers = #tpu.dot_dimension_numbers<[1], [0], [0], [1], [0, 0, 1, 1], [], []>} : vector<512x128xbf16>, vector<128x128xbf16>, vector<512x128xf32> -> vector<512x128xf32>
    %c0_8 = arith.constant 0 : index
    %c0_9 = arith.constant 0 : index
    %27 = vector.load %arg5[%c0_8, %c0_9] : memref<1x128xf32, #tpu.memory_space<vmem>>, vector<1x128xf32>
    %28 = vector.broadcast %27 : vector<1x128xf32> to vector<512x128xf32>
    %29 = arith.addf %26, %28 : vector<512x128xf32>
    %cst_10 = arith.constant 0.000000e+00 : f32
    %30 = vector.broadcast %cst_10 : f32 to vector<512x128xf32>
    %31 = arith.maximumf %29, %30 : vector<512x128xf32>
    %c0_11 = arith.constant 0 : index
    %c0_12 = arith.constant 0 : index
    %32 = vector.load %arg6[%c0_11, %c0_12] : memref<1x128xf32, #tpu.memory_space<vmem>>, vector<1x128xf32>
    %33 = vector.broadcast %32 : vector<1x128xf32> to vector<512x128xf32>
    %34 = arith.mulf %31, %33 : vector<512x128xf32>
    %cst_13 = arith.constant dense<0.000000e+00> : vector<512xf32>
    %35 = vector.multi_reduction <add>, %34, %cst_13 [1] : vector<512x128xf32> to vector<512xf32>
    %36 = vector.shape_cast %35 : vector<512xf32> to vector<512x1xf32>
    %c0_14 = arith.constant 0 : index
    %c0_15 = arith.constant 0 : index
    %37 = vector.load %arg7[%c0_14, %c0_15] : memref<1x1xf32, #tpu.memory_space<vmem>>, vector<1x1xf32>
    %38 = vector.broadcast %37 : vector<1x1xf32> to vector<512x1xf32>
    %39 = arith.addf %36, %38 : vector<512x1xf32>
    %40 = math.tanh %39 : vector<512x1xf32>
    %c0_16 = arith.constant 0 : index
    %c0_17 = arith.constant 0 : index
    %41 = vector.load %arg8[%c0_16, %c0_17] : memref<512x1xf32, #tpu.memory_space<vmem>>, vector<512x1xf32>
    tpu.vector_store %arg8[%c0_16, %c0_17], %40 {strides = array<i32>} : memref<512x1xf32, #tpu.memory_space<vmem>>, vector<512x1xf32>,
    return
  }
  func.func @transform_0(%arg0: i32) -> (i32, i32) {
    %c0_i32 = arith.constant 0 : i32
    %c0_i32_0 = arith.constant 0 : i32
    return %arg0, %c0_i32 : i32, i32
  }
  func.func @transform_1(%arg0: i32) -> (i32, i32) {
    %c0_i32 = arith.constant 0 : i32
    %c0_i32_0 = arith.constant 0 : i32
    %c0_i32_1 = arith.constant 0 : i32
    return %c0_i32, %c0_i32_0 : i32, i32
  }
  func.func @transform_2(%arg0: i32) -> (i32, i32) {
    %c0_i32 = arith.constant 0 : i32
    %c0_i32_0 = arith.constant 0 : i32
    %c0_i32_1 = arith.constant 0 : i32
    return %c0_i32, %c0_i32_0 : i32, i32
  }
  func.func @transform_3(%arg0: i32) -> (i32, i32) {
    %c0_i32 = arith.constant 0 : i32
    %c0_i32_0 = arith.constant 0 : i32
    %c0_i32_1 = arith.constant 0 : i32
    return %c0_i32, %c0_i32_0 : i32, i32
  }
  func.func @transform_4(%arg0: i32) -> (i32, i32) {
    %c0_i32 = arith.constant 0 : i32
    %c0_i32_0 = arith.constant 0 : i32
    %c0_i32_1 = arith.constant 0 : i32
    return %c0_i32, %c0_i32_0 : i32, i32
  }
  func.func @transform_5(%arg0: i32) -> (i32, i32) {
    %c0_i32 = arith.constant 0 : i32
    %c0_i32_0 = arith.constant 0 : i32
    %c0_i32_1 = arith.constant 0 : i32
    return %c0_i32, %c0_i32_0 : i32, i32
  }
  func.func @transform_6(%arg0: i32) -> (i32, i32) {
    %c0_i32 = arith.constant 0 : i32
    %c0_i32_0 = arith.constant 0 : i32
    %c0_i32_1 = arith.constant 0 : i32
    return %c0_i32, %c0_i32_0 : i32, i32
  }
  func.func @transform_7(%arg0: i32) -> (i32, i32) {
    %c0_i32 = arith.constant 0 : i32
    %c0_i32_0 = arith.constant 0 : i32
    return %arg0, %c0_i32 : i32, i32
  }
}

</mosaic_0001>

<llo_original>
// kernel: policy_forward.1
$region0: #{policy_forward.1}
  #allocation0 [shape = 'u32[]', space=smem, size = 0x4, offset = 0x4, fixed_abs, tag = 'smem constant byte address 0x4 - core index']
  #allocation1 [shape = 'u32[144,128]{1,0:T(1,128)}', space=vmem, size = 0x12000, scoped, tag = 'internal scratch']
  #allocation2 [shape = 'f32[1,1]{1,0:T(1,128)S(1)}', space=vmem, size = 0x200, scoped, tag = 'scoped memory for policy_forward.1']
  %s0 = inlined_call_operand.vmem [shape: f32[1024,3], index: 0, kind: input, shape index: {}]
  %s1 = inlined_call_operand.vmem [shape: f32[3,128], index: 1, kind: input, shape index: {}]
  %s2 = inlined_call_operand.vmem [shape: f32[1,128], index: 2, kind: input, shape index: {}]
  %s3 = inlined_call_operand.vmem [shape: bf16[128,128], index: 3, kind: input, shape index: {}]
  %s4 = inlined_call_operand.vmem [shape: f32[1,128], index: 4, kind: input, shape index: {}]
  %s5 = inlined_call_operand.vmem [shape: f32[1,128], index: 5, kind: input, shape index: {}]
  %s6 = inlined_call_operand.<no memory space> [shape: f32[1,1], index: 6, kind: input, shape index: {}]
  %s7 = inlined_call_operand.vmem [shape: f32[1024,1], index: 7, kind: output, shape index: {}]
  %s8 = sld [smem:[#allocation0]]
  $region61: #{policy_forward.1} parent=0
    _
  %s10 = ssub.s32 1, %s8
  %s11 = scalar_select 0, %s10, %s8
  %v12 = vstv %s6
  %13 = vst [vmem:[#allocation2] sm:$0x1] %v12
  loop: start=0, step=1, limit=4
  $region2: #{policy_forward.1} parent=0 // loop_pre_header
    _
  $region3: #{policy_forward.1} parent=0 // loop_header
    %s15 = sphi 0, %s19
    %p16 = scmp.ge.s32.totalorder %s15, 4
    %s25 = sphi 0, %s27
    %s28 = sphi 0, %s25
    %s29 = sphi 0, %s28
    %s45 = sphi 0, %s29
    %s49 = sphi 0, %s49
    %s51 = sphi 0, %s49
    %s52 = sphi 0, %s51
    %s66 = sphi 0, %s52
    %s70 = sphi 0, %s70
    %s72 = sphi 0, %s70
    %s73 = sphi 0, %s72
    %s87 = sphi 0, %s73
    %s91 = sphi 0, %s91
    %s93 = sphi 0, %s91
    %s94 = sphi 0, %s93
    %s108 = sphi 0, %s94
    %s112 = sphi 0, %s112
    %s114 = sphi 0, %s112
    %s115 = sphi 0, %s114
    %s129 = sphi 0, %s115
    %s133 = sphi 0, %s133
    %s135 = sphi 0, %s133
    %s136 = sphi 0, %s135
    %s150 = sphi 0, %s136
    %s154 = sphi 0, %s154
    %s156 = sphi 0, %s154
    %s157 = sphi 0, %s156
    %s171 = sphi 0, %s157
    %s177 = sphi 0, %s179
    %s180 = sphi 0, %s177
    %s181 = sphi 0, %s180
    %s197 = sphi 0, %s181
  $region4: #{policy_forward.1} parent=0 // loop_header_branch
    %18 = sbr.rel (%p16) target = $region8
  $region5: #{policy_forward.1} parent=0 // loop_body
    %s20 = ssub.s32 %s15, 1
    %s21 = ssub.s32 %s15, 2
    %s22 = sadd.s32 %s15, 1
    %s23 = ssub.s32 %s15, %s22
    %p24 = scmp.eq.s32.totalorder %s23, 0
    %s26 = sadd.s32 %s25, 1
    %s27 = scalar_select %p24, %s25, %s26
    %p30 = pneg %p24
    %p31 = scmp.eq.s32.totalorder %s15, 1
    %p32 = por %p30, %p31
    %p33 = scmp.ne.s32.totalorder %s25, %s28
    %p34 = scmp.eq.s32.totalorder %s15, 0
    %p35 = por %p33, %p34
    %p36 = scmp.ne.s32.totalorder %s25, %s28
    %p37 = scmp.eq.s32.totalorder %s20, 1
    %p38 = por %p36, %p37
    %p39 = scmp.ne.s32.totalorder %s28, %s29
    %p40 = scmp.eq.s32.totalorder %s20, 0
    %p41 = por %p39, %p40
    %p42 = scmp.ne.s32.totalorder %s28, %s29
    %p43 = scmp.eq.s32.totalorder %s21, 1
    %p44 = por %p42, %p43
    %p46 = scmp.ne.s32.totalorder %s29, %s45
    %p47 = scmp.eq.s32.totalorder %s21, 0
    %p48 = por %p46, %p47
    %s50 = sadd.s32 %s49, 1
    %p53 = scmp.eq.s32.totalorder %s15, 1
    %p54 = scmp.ne.s32.totalorder %s49, %s51
    %p55 = scmp.eq.s32.totalorder %s15, 0
    %p56 = por %p54, %p55
    %p57 = scmp.ne.s32.totalorder %s49, %s51
    %p58 = scmp.eq.s32.totalorder %s20, 1
    %p59 = por %p57, %p58
    %p60 = scmp.ne.s32.totalorder %s51, %s52
    %p61 = scmp.eq.s32.totalorder %s20, 0
    %p62 = por %p60, %p61
    %p63 = scmp.ne.s32.totalorder %s51, %s52
    %p64 = scmp.eq.s32.totalorder %s21, 1
    %p65 = por %p63, %p64
    %p67 = scmp.ne.s32.totalorder %s52, %s66
    %p68 = scmp.eq.s32.totalorder %s21, 0
    %p69 = por %p67, %p68
    %s71 = sadd.s32 %s70, 1
    %p74 = scmp.eq.s32.totalorder %s15, 1
    %p75 = scmp.ne.s32.totalorder %s70, %s72
    %p76 = scmp.eq.s32.totalorder %s15, 0
    %p77 = por %p75, %p76
    %p78 = scmp.ne.s32.totalorder %s70, %s72
    %p79 = scmp.eq.s32.totalorder %s20, 1
    %p80 = por %p78, %p79
    %p81 = scmp.ne.s32.totalorder %s72, %s73
    %p82 = scmp.eq.s32.totalorder %s20, 0
    %p83 = por %p81, %p82
    %p84 = scmp.ne.s32.totalorder %s72, %s73
    %p85 = scmp.eq.s32.totalorder %s21, 1
    %p86 = por %p84, %p85
    %p88 = scmp.ne.s32.totalorder %s73, %s87
    %p89 = scmp.eq.s32.totalorder %s21, 0
    %p90 = por %p88, %p89
    %s92 = sadd.s32 %s91, 1
    %p95 = scmp.eq.s32.totalorder %s15, 1
    %p96 = scmp.ne.s32.totalorder %s91, %s93
    %p97 = scmp.eq.s32.totalorder %s15, 0
    %p98 = por %p96, %p97
    %p99 = scmp.ne.s32.totalorder %s91, %s93
    %p100 = scmp.eq.s32.totalorder %s20, 1
    %p101 = por %p99, %p100
    %p102 = scmp.ne.s32.totalorder %s93, %s94
    %p103 = scmp.eq.s32.totalorder %s20, 0
    %p104 = por %p102, %p103
    %p105 = scmp.ne.s32.totalorder %s93, %s94
    %p106 = scmp.eq.s32.totalorder %s21, 1
    %p107 = por %p105, %p106
    %p109 = scmp.ne.s32.totalorder %s94, %s108
    %p110 = scmp.eq.s32.totalorder %s21, 0
    %p111 = por %p109, %p110
    %s113 = sadd.s32 %s112, 1
    %p116 = scmp.eq.s32.totalorder %s15, 1
    %p117 = scmp.ne.s32.totalorder %s112, %s114
    %p118 = scmp.eq.s32.totalorder %s15, 0
    %p119 = por %p117, %p118
    %p120 = scmp.ne.s32.totalorder %s112, %s114
    %p121 = scmp.eq.s32.totalorder %s20, 1
    %p122 = por %p120, %p121
    %p123 = scmp.ne.s32.totalorder %s114, %s115
    %p124 = scmp.eq.s32.totalorder %s20, 0
    %p125 = por %p123, %p124
    %p126 = scmp.ne.s32.totalorder %s114, %s115
    %p127 = scmp.eq.s32.totalorder %s21, 1
    %p128 = por %p126, %p127
    %p130 = scmp.ne.s32.totalorder %s115, %s129
    %p131 = scmp.eq.s32.totalorder %s21, 0
    %p132 = por %p130, %p131
    %s134 = sadd.s32 %s133, 1
    %p137 = scmp.eq.s32.totalorder %s15, 1
    %p138 = scmp.ne.s32.totalorder %s133, %s135
    %p139 = scmp.eq.s32.totalorder %s15, 0
    %p140 = por %p138, %p139
    %p141 = scmp.ne.s32.totalorder %s133, %s135
    %p142 = scmp.eq.s32.totalorder %s20, 1
    %p143 = por %p141, %p142
    %p144 = scmp.ne.s32.totalorder %s135, %s136
    %p145 = scmp.eq.s32.totalorder %s20, 0
    %p146 = por %p144, %p145
    %p147 = scmp.ne.s32.totalorder %s135, %s136
    %p148 = scmp.eq.s32.totalorder %s21, 1
    %p149 = por %p147, %p148
    %p151 = scmp.ne.s32.totalorder %s136, %s150
    %p152 = scmp.eq.s32.totalorder %s21, 0
    %p153 = por %p151, %p152
    %s155 = sadd.s32 %s154, 1
    %p158 = scmp.eq.s32.totalorder %s15, 1
    %p159 = scmp.ne.s32.totalorder %s154, %s156
    %p160 = scmp.eq.s32.totalorder %s15, 0
    %p161 = por %p159, %p160
    %p162 = scmp.ne.s32.totalorder %s154, %s156
    %p163 = scmp.eq.s32.totalorder %s20, 1
    %p164 = por %p162, %p163
    %p165 = scmp.ne.s32.totalorder %s156, %s157
    %p166 = scmp.eq.s32.totalorder %s20, 0
    %p167 = por %p165, %p166
    %p168 = scmp.ne.s32.totalorder %s156, %s157
    %p169 = scmp.eq.s32.totalorder %s21, 1
    %p170 = por %p168, %p169
    %p172 = scmp.ne.s32.totalorder %s157, %s171
    %p173 = scmp.eq.s32.totalorder %s21, 0
    %p174 = por %p172, %p173
    %s175 = ssub.s32 %s15, %s22
    %p176 = scmp.eq.s32.totalorder %s175, 0
    %s178 = sadd.s32 %s177, 1
    %s179 = scalar_select %p176, %s177, %s178
    %p182 = pneg %p176
    %p183 = scmp.eq.s32.totalorder %s15, 1
    %p184 = por %p182, %p183
    %p185 = scmp.ne.s32.totalorder %s177, %s180
    %p186 = scmp.eq.s32.totalorder %s15, 0
    %p187 = por %p185, %p186
    %p188 = scmp.ne.s32.totalorder %s177, %s180
    %p189 = scmp.eq.s32.totalorder %s20, 1
    %p190 = por %p188, %p189
    %p191 = scmp.ne.s32.totalorder %s180, %s181
    %p192 = scmp.eq.s32.totalorder %s20, 0
    %p193 = por %p191, %p192
    %p194 = scmp.ne.s32.totalorder %s180, %s181
    %p195 = scmp.eq.s32.totalorder %s21, 1
    %p196 = por %p194, %p195
    %p198 = scmp.ne.s32.totalorder %s181, %s197
    %p199 = scmp.eq.s32.totalorder %s21, 0
    %p200 = por %p198, %p199
    %p201 = scmp.le.s32.totalorder 1, %s15
    %p202 = scmp.lt.s32.totalorder %s15, 3
    %p203 = pnand %p201, %p202
    %p204 = pneg %p203
    // Predicated region
    $region9: #{policy_forward.1} parent=5 // pred_check
      _
    $region10: #{policy_forward.1} parent=5 // pred_check_branch
      %206 = sbr.rel (%p203) target = $region12
    $region11: #{policy_forward.1} parent=5 // pred_region
      %s207 = ssub.s32 %s15, 1
      // Predicated region
      $region13: #{policy_forward.1} parent=11 // pred_check
        %p208 = pneg %p62
      $region14: #{policy_forward.1} parent=11 // pred_check_branch
        %210 = sbr.rel (%p208) target = $region16
      $region15: #{policy_forward.1} parent=11 // pred_region
        _
      $region16: #{policy_forward.1} parent=11 // pred_fallthru
        _
      // Predicated region
      $region17: #{policy_forward.1} parent=11 // pred_check
        %p211 = pneg %p83
      $region18: #{policy_forward.1} parent=11 // pred_check_branch
        %213 = sbr.rel (%p211) target = $region20
      $region19: #{policy_forward.1} parent=11 // pred_region
        _
      $region20: #{policy_forward.1} parent=11 // pred_fallthru
        _
      // Predicated region
      $region21: #{policy_forward.1} parent=11 // pred_check
        %p214 = pneg %p104
      $region22: #{policy_forward.1} parent=11 // pred_check_branch
        %216 = sbr.rel (%p214) target = $region24
      $region23: #{policy_forward.1} parent=11 // pred_region
        _
      $region24: #{policy_forward.1} parent=11 // pred_fallthru
        _
      // Predicated region
      $region25: #{policy_forward.1} parent=11 // pred_check
        %p217 = pneg %p125
      $region26: #{policy_forward.1} parent=11 // pred_check_branch
        %219 = sbr.rel (%p217) target = $region28
      $region27: #{policy_forward.1} parent=11 // pred_region
        _
      $region28: #{policy_forward.1} parent=11 // pred_fallthru
        _
      // Predicated region
      $region29: #{policy_forward.1} parent=11 // pred_check
        %p220 = pneg %p146
      $region30: #{policy_forward.1} parent=11 // pred_check_branch
        %222 = sbr.rel (%p220) target = $region32
      $region31: #{policy_forward.1} parent=11 // pred_region
        _
      $region32: #{policy_forward.1} parent=11 // pred_fallthru
        _
      // Predicated region
      $region33: #{policy_forward.1} parent=11 // pred_check
        %p223 = pneg %p167
      $region34: #{policy_forward.1} parent=11 // pred_check_branch
        %225 = sbr.rel (%p223) target = $region36
      $region35: #{policy_forward.1} parent=11 // pred_region
        _
      $region36: #{policy_forward.1} parent=11 // pred_fallthru
        _
    $region12: #{policy_forward.1} parent=5 // pred_fallthru
      _
    %p226 = scmp.lt.s32.totalorder %s15, 2
    // Predicated region
    $region37: #{policy_forward.1} parent=5 // pred_check
      %p227 = pneg %p226
    $region38: #{policy_forward.1} parent=5 // pred_check_branch
      %229 = sbr.rel (%p227) target = $region40
    $region39: #{policy_forward.1} parent=5 // pred_region
      // Predicated region
      $region41: #{policy_forward.1} parent=39 // pred_check
        %p230 = pneg %p35
      $region42: #{policy_forward.1} parent=39 // pred_check_branch
        %232 = sbr.rel (%p230) target = $region44
      $region43: #{policy_forward.1} parent=39 // pred_region
        %s233 = smul.u32 64, %s15
        %p234 = scmp.lt.s32.totalorder %s233, 127
        %s235 = scalar_select %p234, %s233, 127
        %s236 = smul.addr %s235, 8
        %s237 = scalar_lea.vmem %s0, %s236
        %s238 = smul.u32 64, %s15
      $region44: #{policy_forward.1} parent=39 // pred_fallthru
        _
    $region40: #{policy_forward.1} parent=5 // pred_fallthru
      _
    %p239 = scmp.le.s32.totalorder 1, %s15
    %p240 = scmp.lt.s32.totalorder %s15, 3
    %p241 = pnand %p239, %p240
    %p242 = pneg %p241
    // Predicated region
    $region45: #{policy_forward.1} parent=5 // pred_check
      _
    $region46: #{policy_forward.1} parent=5 // pred_check_branch
      %244 = sbr.rel (%p241) target = $region48
    $region47: #{policy_forward.1} parent=5 // pred_region
      %s245 = ssub.s32 %s15, 1
      %s246 = smul.u32 64, %s20
      %p247 = scmp.lt.s32.totalorder %s246, 127
      %s248 = scalar_select %p247, %s246, 127
      %s249 = smul.addr %s248, 8
      %s250 = scalar_lea.vmem %s0, %s249
      %p251 = pneg %p41
      %p252 = pneg %p38
      %p253 = pneg %p62
      %p254 = pneg %p59
      %p255 = pneg %p83
      %p256 = pneg %p80
      %p257 = pneg %p104
      %p258 = pneg %p101
      %p259 = pneg %p125
      %p260 = pneg %p122
      %p261 = pneg %p146
      %p262 = pneg %p143
      %p263 = pneg %p167
      %p264 = pneg %p164
      %p265 = pneg %p193
      %p266 = pneg %p190
      %s267 = smul.u32 64, %s20
      %p268 = scmp.lt.s32.totalorder %s267, 127
      %s269 = scalar_select %p268, %s267, 127
      %s270 = smul.addr %s269, 8
      %s271 = scalar_lea.vmem %s7, %s270
      %s272 = smul.u32 64, %s20
      %p273 = scmp.lt.s32.totalorder %s272, 127
      %s274 = scalar_select %p273, %s272, 127
      %s275 = smul.addr %s274, 8
      %s276 = scalar_lea.vmem %s0, %s275
      %s277 = smul.u32 64, %s20
      %s278 = smul.u32 64, %s20
      %p279 = scmp.lt.s32.totalorder %s278, 127
      %s280 = scalar_select %p279, %s278, 127
      %s281 = smul.addr %s280, 8
      %s282 = scalar_lea.vmem %s7, %s281
      %s283 = smul.u32 64, %s20
      %v285 = vld [vmem:[%s276] sm:$0xff]
      %v286 = vld [vmem:[%s276 + $0x8] sm:$0xff]
      %v287 = vld [vmem:[%s276 + $0x10] sm:$0xff]
      %v288 = vld [vmem:[%s276 + $0x18] sm:$0xff]
      %v289 = vld [vmem:[%s276 + $0x20] sm:$0xff]
      %v290 = vld [vmem:[%s276 + $0x28] sm:$0xff]
      %v291 = vld [vmem:[%s276 + $0x30] sm:$0xff]
      %v292 = vld [vmem:[%s276 + $0x38] sm:$0xff]
      %v293 = vld [vmem:[%s276 + $0x40] sm:$0xff]
      %v294 = vld [vmem:[%s276 + $0x48] sm:$0xff]
      %v295 = vld [vmem:[%s276 + $0x50] sm:$0xff]
      %v296 = vld [vmem:[%s276 + $0x58] sm:$0xff]
      %v297 = vld [vmem:[%s276 + $0x60] sm:$0xff]
      %v298 = vld [vmem:[%s276 + $0x68] sm:$0xff]
      %v299 = vld [vmem:[%s276 + $0x70] sm:$0xff]
      %v300 = vld [vmem:[%s276 + $0x78] sm:$0xff]
      %v301 = vld [vmem:[%s276 + $0x80] sm:$0xff]
      %v302 = vld [vmem:[%s276 + $0x88] sm:$0xff]
      %v303 = vld [vmem:[%s276 + $0x90] sm:$0xff]
      %v304 = vld [vmem:[%s276 + $0x98] sm:$0xff]
      %v305 = vld [vmem:[%s276 + $0xa0] sm:$0xff]
      %v306 = vld [vmem:[%s276 + $0xa8] sm:$0xff]
      %v307 = vld [vmem:[%s276 + $0xb0] sm:$0xff]
      %v308 = vld [vmem:[%s276 + $0xb8] sm:$0xff]
      %v309 = vld [vmem:[%s276 + $0xc0] sm:$0xff]
      %v310 = vld [vmem:[%s276 + $0xc8] sm:$0xff]
      %v311 = vld [vmem:[%s276 + $0xd0] sm:$0xff]
      %v312 = vld [vmem:[%s276 + $0xd8] sm:$0xff]
      %v313 = vld [vmem:[%s276 + $0xe0] sm:$0xff]
      %v314 = vld [vmem:[%s276 + $0xe8] sm:$0xff]
      %v315 = vld [vmem:[%s276 + $0xf0] sm:$0xff]
      %v316 = vld [vmem:[%s276 + $0xf8] sm:$0xff]
      %v317 = vld [vmem:[%s276 + $0x100] sm:$0xff]
      %v318 = vld [vmem:[%s276 + $0x108] sm:$0xff]
      %v319 = vld [vmem:[%s276 + $0x110] sm:$0xff]
      %v320 = vld [vmem:[%s276 + $0x118] sm:$0xff]
      %v321 = vld [vmem:[%s276 + $0x120] sm:$0xff]
      %v322 = vld [vmem:[%s276 + $0x128] sm:$0xff]
      %v323 = vld [vmem:[%s276 + $0x130] sm:$0xff]
      %v324 = vld [vmem:[%s276 + $0x138] sm:$0xff]
      %v325 = vld [vmem:[%s276 + $0x140] sm:$0xff]
      %v326 = vld [vmem:[%s276 + $0x148] sm:$0xff]
      %v327 = vld [vmem:[%s276 + $0x150] sm:$0xff]
      %v328 = vld [vmem:[%s276 + $0x158] sm:$0xff]
      %v329 = vld [vmem:[%s276 + $0x160] sm:$0xff]
      %v330 = vld [vmem:[%s276 + $0x168] sm:$0xff]
      %v331 = vld [vmem:[%s276 + $0x170] sm:$0xff]
      %v332 = vld [vmem:[%s276 + $0x178] sm:$0xff]
      %v333 = vld [vmem:[%s276 + $0x180] sm:$0xff]
      %v334 = vld [vmem:[%s276 + $0x188] sm:$0xff]
      %v335 = vld [vmem:[%s276 + $0x190] sm:$0xff]
      %v336 = vld [vmem:[%s276 + $0x198] sm:$0xff]
      %v337 = vld [vmem:[%s276 + $0x1a0] sm:$0xff]
      %v338 = vld [vmem:[%s276 + $0x1a8] sm:$0xff]
      %v339 = vld [vmem:[%s276 + $0x1b0] sm:$0xff]
      %v340 = vld [vmem:[%s276 + $0x1b8] sm:$0xff]
      %v341 = vld [vmem:[%s276 + $0x1c0] sm:$0xff]
      %v342 = vld [vmem:[%s276 + $0x1c8] sm:$0xff]
      %v343 = vld [vmem:[%s276 + $0x1d0] sm:$0xff]
      %v344 = vld [vmem:[%s276 + $0x1d8] sm:$0xff]
      %v345 = vld [vmem:[%s276 + $0x1e0] sm:$0xff]
      %v346 = vld [vmem:[%s276 + $0x1e8] sm:$0xff]
      %v347 = vld [vmem:[%s276 + $0x1f0] sm:$0xff]
      %v348 = vld [vmem:[%s276 + $0x1f8] sm:$0xff]
      %v349 = vld [vmem:[%s1] sm:$0x7]
      %v350 = vld [vmem:[%s2] sm:$0x1]
      %352 = vset.pattern.permute.xlu0 0
      %353 = vperm.xlu0 %352, %v285
      %v354 = vpop.permute.xlu0 %353
      %357 = vset.pattern.permute.xlu0 0
      %358 = vperm.xlu0 %357, %v286
      %v359 = vpop.permute.xlu0 %358
      %362 = vset.pattern.permute.xlu0 0
      %363 = vperm.xlu0 %362, %v287
      %v364 = vpop.permute.xlu0 %363
      %367 = vset.pattern.permute.xlu0 0
      %368 = vperm.xlu0 %367, %v288
      %v369 = vpop.permute.xlu0 %368
      %372 = vset.pattern.permute.xlu0 0
      %373 = vperm.xlu0 %372, %v289
      %v374 = vpop.permute.xlu0 %373
      %377 = vset.pattern.permute.xlu0 0
      %378 = vperm.xlu0 %377, %v290
      %v379 = vpop.permute.xlu0 %378
      %382 = vset.pattern.permute.xlu0 0
      %383 = vperm.xlu0 %382, %v291
      %v384 = vpop.permute.xlu0 %383
      %387 = vset.pattern.permute.xlu0 0
      %388 = vperm.xlu0 %387, %v292
      %v389 = vpop.permute.xlu0 %388
      %392 = vset.pattern.permute.xlu0 0
      %393 = vperm.xlu0 %392, %v293
      %v394 = vpop.permute.xlu0 %393
      %397 = vset.pattern.permute.xlu0 0
      %398 = vperm.xlu0 %397, %v294
      %v399 = vpop.permute.xlu0 %398
      %402 = vset.pattern.permute.xlu0 0
      %403 = vperm.xlu0 %402, %v295
      %v404 = vpop.permute.xlu0 %403
      %407 = vset.pattern.permute.xlu0 0
      %408 = vperm.xlu0 %407, %v296
      %v409 = vpop.permute.xlu0 %408
      %412 = vset.pattern.permute.xlu0 0
      %413 = vperm.xlu0 %412, %v297
      %v414 = vpop.permute.xlu0 %413
      %417 = vset.pattern.permute.xlu0 0
      %418 = vperm.xlu0 %417, %v298
      %v419 = vpop.permute.xlu0 %418
      %422 = vset.pattern.permute.xlu0 0
      %423 = vperm.xlu0 %422, %v299
      %v424 = vpop.permute.xlu0 %423
      %427 = vset.pattern.permute.xlu0 0
      %428 = vperm.xlu0 %427, %v300
      %v429 = vpop.permute.xlu0 %428
      %432 = vset.pattern.permute.xlu0 0
      %433 = vperm.xlu0 %432, %v301
      %v434 = vpop.permute.xlu0 %433
      %437 = vset.pattern.permute.xlu0 0
      %438 = vperm.xlu0 %437, %v302
      %v439 = vpop.permute.xlu0 %438
      %442 = vset.pattern.permute.xlu0 0
      %443 = vperm.xlu0 %442, %v303
      %v444 = vpop.permute.xlu0 %443
      %447 = vset.pattern.permute.xlu0 0
      %448 = vperm.xlu0 %447, %v304
      %v449 = vpop.permute.xlu0 %448
      %452 = vset.pattern.permute.xlu0 0
      %453 = vperm.xlu0 %452, %v305
      %v454 = vpop.permute.xlu0 %453
      %457 = vset.pattern.permute.xlu0 0
      %458 = vperm.xlu0 %457, %v306
      %v459 = vpop.permute.xlu0 %458
      %462 = vset.pattern.permute.xlu0 0
      %463 = vperm.xlu0 %462, %v307
      %v464 = vpop.permute.xlu0 %463
      %467 = vset.pattern.permute.xlu0 0
      %468 = vperm.xlu0 %467, %v308
      %v469 = vpop.permute.xlu0 %468
      %472 = vset.pattern.permute.xlu0 0
      %473 = vperm.xlu0 %472, %v309
      %v474 = vpop.permute.xlu0 %473
      %477 = vset.pattern.permute.xlu0 0
      %478 = vperm.xlu0 %477, %v310
      %v479 = vpop.permute.xlu0 %478
      %482 = vset.pattern.permute.xlu0 0
      %483 = vperm.xlu0 %482, %v311
      %v484 = vpop.permute.xlu0 %483
      %487 = vset.pattern.permute.xlu0 0
      %488 = vperm.xlu0 %487, %v312
      %v489 = vpop.permute.xlu0 %488
      %492 = vset.pattern.permute.xlu0 0
      %493 = vperm.xlu0 %492, %v313
      %v494 = vpop.permute.xlu0 %493
      %497 = vset.pattern.permute.xlu0 0
      %498 = vperm.xlu0 %497, %v314
      %v499 = vpop.permute.xlu0 %498
      %502 = vset.pattern.permute.xlu0 0
      %503 = vperm.xlu0 %502, %v315
      %v504 = vpop.permute.xlu0 %503
      %507 = vset.pattern.permute.xlu0 0
      %508 = vperm.xlu0 %507, %v316
      %v509 = vpop.permute.xlu0 %508
      %512 = vset.pattern.permute.xlu0 0
      %513 = vperm.xlu0 %512, %v317
      %v514 = vpop.permute.xlu0 %513
      %517 = vset.pattern.permute.xlu0 0
      %518 = vperm.xlu0 %517, %v318
      %v519 = vpop.permute.xlu0 %518
      %522 = vset.pattern.permute.xlu0 0
      %523 = vperm.xlu0 %522, %v319
      %v524 = vpop.permute.xlu0 %523
      %527 = vset.pattern.permute.xlu0 0
      %528 = vperm.xlu0 %527, %v320
      %v529 = vpop.permute.xlu0 %528
      %532 = vset.pattern.permute.xlu0 0
      %533 = vperm.xlu0 %532, %v321
      %v534 = vpop.permute.xlu0 %533
      %537 = vset.pattern.permute.xlu0 0
      %538 = vperm.xlu0 %537, %v322
      %v539 = vpop.permute.xlu0 %538
      %542 = vset.pattern.permute.xlu0 0
      %543 = vperm.xlu0 %542, %v323
      %v544 = vpop.permute.xlu0 %543
      %547 = vset.pattern.permute.xlu0 0
      %548 = vperm.xlu0 %547, %v324
      %v549 = vpop.permute.xlu0 %548
      %552 = vset.pattern.permute.xlu0 0
      %553 = vperm.xlu0 %552, %v325
      %v554 = vpop.permute.xlu0 %553
      %557 = vset.pattern.permute.xlu0 0
      %558 = vperm.xlu0 %557, %v326
      %v559 = vpop.permute.xlu0 %558
      %562 = vset.pattern.permute.xlu0 0
      %563 = vperm.xlu0 %562, %v327
      %v564 = vpop.permute.xlu0 %563
      %567 = vset.pattern.permute.xlu0 0
      %568 = vperm.xlu0 %567, %v328
      %v569 = vpop.permute.xlu0 %568
      %572 = vset.pattern.permute.xlu0 0
      %573 = vperm.xlu0 %572, %v329
      %v574 = vpop.permute.xlu0 %573
      %577 = vset.pattern.permute.xlu0 0
      %578 = vperm.xlu0 %577, %v330
      %v579 = vpop.permute.xlu0 %578
      %582 = vset.pattern.permute.xlu0 0
      %583 = vperm.xlu0 %582, %v331
      %v584 = vpop.permute.xlu0 %583
      %587 = vset.pattern.permute.xlu0 0
      %588 = vperm.xlu0 %587, %v332
      %v589 = vpop.permute.xlu0 %588
      %592 = vset.pattern.permute.xlu0 0
      %593 = vperm.xlu0 %592, %v333
      %v594 = vpop.permute.xlu0 %593
      %597 = vset.pattern.permute.xlu0 0
      %598 = vperm.xlu0 %597, %v334
      %v599 = vpop.permute.xlu0 %598
      %602 = vset.pattern.permute.xlu0 0
      %603 = vperm.xlu0 %602, %v335
      %v604 = vpop.permute.xlu0 %603
      %607 = vset.pattern.permute.xlu0 0
      %608 = vperm.xlu0 %607, %v336
      %v609 = vpop.permute.xlu0 %608
      %612 = vset.pattern.permute.xlu0 0
      %613 = vperm.xlu0 %612, %v337
      %v614 = vpop.permute.xlu0 %613
      %617 = vset.pattern.permute.xlu0 0
      %618 = vperm.xlu0 %617, %v338
      %v619 = vpop.permute.xlu0 %618
      %622 = vset.pattern.permute.xlu0 0
      %623 = vperm.xlu0 %622, %v339
      %v624 = vpop.permute.xlu0 %623
      %627 = vset.pattern.permute.xlu0 0
      %628 = vperm.xlu0 %627, %v340
      %v629 = vpop.permute.xlu0 %628
      %632 = vset.pattern.permute.xlu0 0
      %633 = vperm.xlu0 %632, %v341
      %v634 = vpop.permute.xlu0 %633
      %637 = vset.pattern.permute.xlu0 0
      %638 = vperm.xlu0 %637, %v342
      %v639 = vpop.permute.xlu0 %638
      %642 = vset.pattern.permute.xlu0 0
      %643 = vperm.xlu0 %642, %v343
      %v644 = vpop.permute.xlu0 %643
      %647 = vset.pattern.permute.xlu0 0
      %648 = vperm.xlu0 %647, %v344
      %v649 = vpop.permute.xlu0 %648
      %652 = vset.pattern.permute.xlu0 0
      %653 = vperm.xlu0 %652, %v345
      %v654 = vpop.permute.xlu0 %653
      %657 = vset.pattern.permute.xlu0 0
      %658 = vperm.xlu0 %657, %v346
      %v659 = vpop.permute.xlu0 %658
      %662 = vset.pattern.permute.xlu0 0
      %663 = vperm.xlu0 %662, %v347
      %v664 = vpop.permute.xlu0 %663
      %667 = vset.pattern.permute.xlu0 0
      %668 = vperm.xlu0 %667, %v348
      %v669 = vpop.permute.xlu0 %668
      %v671 = vlaneseq
      %v672 = vshrl.u32 %v671, 7
      %v673 = vsub.s32 0, %v672
      %v674 = vrot.slane %v349, %v673
      %v675 = vmul.f32 %v354, %v674
      %v676 = vmul.f32 %v359, %v674
      %v677 = vmul.f32 %v364, %v674
      %v678 = vmul.f32 %v369, %v674
      %v679 = vmul.f32 %v374, %v674
      %v680 = vmul.f32 %v379, %v674
      %v681 = vmul.f32 %v384, %v674
      %v682 = vmul.f32 %v389, %v674
      %v683 = vmul.f32 %v394, %v674
      %v684 = vmul.f32 %v399, %v674
      %v685 = vmul.f32 %v404, %v674
      %v686 = vmul.f32 %v409, %v674
      %v687 = vmul.f32 %v414, %v674
      %v688 = vmul.f32 %v419, %v674
      %v689 = vmul.f32 %v424, %v674
      %v690 = vmul.f32 %v429, %v674
      %v691 = vmul.f32 %v434, %v674
      %v692 = vmul.f32 %v439, %v674
      %v693 = vmul.f32 %v444, %v674
      %v694 = vmul.f32 %v449, %v674
      %v695 = vmul.f32 %v454, %v674
      %v696 = vmul.f32 %v459, %v674
      %v697 = vmul.f32 %v464, %v674
      %v698 = vmul.f32 %v469, %v674
      %v699 = vmul.f32 %v474, %v674
      %v700 = vmul.f32 %v479, %v674
      %v701 = vmul.f32 %v484, %v674
      %v702 = vmul.f32 %v489, %v674
      %v703 = vmul.f32 %v494, %v674
      %v704 = vmul.f32 %v499, %v674
      %v705 = vmul.f32 %v504, %v674
      %v706 = vmul.f32 %v509, %v674
      %v707 = vmul.f32 %v514, %v674
      %v708 = vmul.f32 %v519, %v674
      %v709 = vmul.f32 %v524, %v674
      %v710 = vmul.f32 %v529, %v674
      %v711 = vmul.f32 %v534, %v674
      %v712 = vmul.f32 %v539, %v674
      %v713 = vmul.f32 %v544, %v674
      %v714 = vmul.f32 %v549, %v674
      %v715 = vmul.f32 %v554, %v674
      %v716 = vmul.f32 %v559, %v674
      %v717 = vmul.f32 %v564, %v674
      %v718 = vmul.f32 %v569, %v674
      %v719 = vmul.f32 %v574, %v674
      %v720 = vmul.f32 %v579, %v674
      %v721 = vmul.f32 %v584, %v674
      %v722 = vmul.f32 %v589, %v674
      %v723 = vmul.f32 %v594, %v674
      %v724 = vmul.f32 %v599, %v674
      %v725 = vmul.f32 %v604, %v674
      %v726 = vmul.f32 %v609, %v674
      %v727 = vmul.f32 %v614, %v674
      %v728 = vmul.f32 %v619, %v674
      %v729 = vmul.f32 %v624, %v674
      %v730 = vmul.f32 %v629, %v674
      %v731 = vmul.f32 %v634, %v674
      %v732 = vmul.f32 %v639, %v674
      %v733 = vmul.f32 %v644, %v674
      %v734 = vmul.f32 %v649, %v674
      %v735 = vmul.f32 %v654, %v674
      %v736 = vmul.f32 %v659, %v674
      %v737 = vmul.f32 %v664, %v674
      %v738 = vmul.f32 %v669, %v674
      %v740 = vlaneseq
      %v741 = vshrl.u32 %v740, 7
      %v742 = vsub.s32 0, %v741
      %v743 = vrot.slane %v350, %v742
      %v745 = vadd.f32 %v743, %v675
      %v746 = vadd.f32 %v743, %v676
      %v747 = vadd.f32 %v743, %v677
      %v748 = vadd.f32 %v743, %v678
      %v749 = vadd.f32 %v743, %v679
      %v750 = vadd.f32 %v743, %v680
      %v751 = vadd.f32 %v743, %v681
      %v752 = vadd.f32 %v743, %v682
      %v753 = vadd.f32 %v743, %v683
      %v754 = vadd.f32 %v743, %v684
      %v755 = vadd.f32 %v743, %v685
      %v756 = vadd.f32 %v743, %v686
      %v757 = vadd.f32 %v743, %v687
      %v758 = vadd.f32 %v743, %v688
      %v759 = vadd.f32 %v743, %v689
      %v760 = vadd.f32 %v743, %v690
      %v761 = vadd.f32 %v743, %v691
      %v762 = vadd.f32 %v743, %v692
      %v763 = vadd.f32 %v743, %v693
      %v764 = vadd.f32 %v743, %v694
      %v765 = vadd.f32 %v743, %v695
      %v766 = vadd.f32 %v743, %v696
      %v767 = vadd.f32 %v743, %v697
      %v768 = vadd.f32 %v743, %v698
      %v769 = vadd.f32 %v743, %v699
      %v770 = vadd.f32 %v743, %v700
      %v771 = vadd.f32 %v743, %v701
      %v772 = vadd.f32 %v743, %v702
      %v773 = vadd.f32 %v743, %v703
      %v774 = vadd.f32 %v743, %v704
      %v775 = vadd.f32 %v743, %v705
      %v776 = vadd.f32 %v743, %v706
      %v777 = vadd.f32 %v743, %v707
      %v778 = vadd.f32 %v743, %v708
      %v779 = vadd.f32 %v743, %v709
      %v780 = vadd.f32 %v743, %v710
      %v781 = vadd.f32 %v743, %v711
      %v782 = vadd.f32 %v743, %v712
      %v783 = vadd.f32 %v743, %v713
      %v784 = vadd.f32 %v743, %v714
      %v785 = vadd.f32 %v743, %v715
      %v786 = vadd.f32 %v743, %v716
      %v787 = vadd.f32 %v743, %v717
      %v788 = vadd.f32 %v743, %v718
      %v789 = vadd.f32 %v743, %v719
      %v790 = vadd.f32 %v743, %v720
      %v791 = vadd.f32 %v743, %v721
      %v792 = vadd.f32 %v743, %v722
      %v793 = vadd.f32 %v743, %v723
      %v794 = vadd.f32 %v743, %v724
      %v795 = vadd.f32 %v743, %v725
      %v796 = vadd.f32 %v743, %v726
      %v797 = vadd.f32 %v743, %v727
      %v798 = vadd.f32 %v743, %v728
      %v799 = vadd.f32 %v743, %v729
      %v800 = vadd.f32 %v743, %v730
      %v801 = vadd.f32 %v743, %v731
      %v802 = vadd.f32 %v743, %v732
      %v803 = vadd.f32 %v743, %v733
      %v804 = vadd.f32 %v743, %v734
      %v805 = vadd.f32 %v743, %v735
      %v806 = vadd.f32 %v743, %v736
      %v807 = vadd.f32 %v743, %v737
      %v808 = vadd.f32 %v743, %v738
      %809 = vset.pattern.permute.xlu0 1
      %810 = vperm.xlu0 %809, %v285
      %v811 = vpop.permute.xlu0 %810
      %813 = vset.pattern.permute.xlu0 1
      %814 = vperm.xlu0 %813, %v286
      %v815 = vpop.permute.xlu0 %814
      %817 = vset.pattern.permute.xlu0 1
      %818 = vperm.xlu0 %817, %v287
      %v819 = vpop.permute.xlu0 %818
      %821 = vset.pattern.permute.xlu0 1
      %822 = vperm.xlu0 %821, %v288
      %v823 = vpop.permute.xlu0 %822
      %825 = vset.pattern.permute.xlu0 1
      %826 = vperm.xlu0 %825, %v289
      %v827 = vpop.permute.xlu0 %826
      %829 = vset.pattern.permute.xlu0 1
      %830 = vperm.xlu0 %829, %v290
      %v831 = vpop.permute.xlu0 %830
      %833 = vset.pattern.permute.xlu0 1
      %834 = vperm.xlu0 %833, %v291
      %v835 = vpop.permute.xlu0 %834
      %837 = vset.pattern.permute.xlu0 1
      %838 = vperm.xlu0 %837, %v292
      %v839 = vpop.permute.xlu0 %838
      %841 = vset.pattern.permute.xlu0 1
      %842 = vperm.xlu0 %841, %v293
      %v843 = vpop.permute.xlu0 %842
      %845 = vset.pattern.permute.xlu0 1
      %846 = vperm.xlu0 %845, %v294
      %v847 = vpop.permute.xlu0 %846
      %849 = vset.pattern.permute.xlu0 1
      %850 = vperm.xlu0 %849, %v295
      %v851 = vpop.permute.xlu0 %850
      %853 = vset.pattern.permute.xlu0 1
      %854 = vperm.xlu0 %853, %v296
      %v855 = vpop.permute.xlu0 %854
      %857 = vset.pattern.permute.xlu0 1
      %858 = vperm.xlu0 %857, %v297
      %v859 = vpop.permute.xlu0 %858
      %861 = vset.pattern.permute.xlu0 1
      %862 = vperm.xlu0 %861, %v298
      %v863 = vpop.permute.xlu0 %862
      %865 = vset.pattern.permute.xlu0 1
      %866 = vperm.xlu0 %865, %v299
      %v867 = vpop.permute.xlu0 %866
      %869 = vset.pattern.permute.xlu0 1
      %870 = vperm.xlu0 %869, %v300
      %v871 = vpop.permute.xlu0 %870
      %873 = vset.pattern.permute.xlu0 1
      %874 = vperm.xlu0 %873, %v301
      %v875 = vpop.permute.xlu0 %874
      %877 = vset.pattern.permute.xlu0 1
      %878 = vperm.xlu0 %877, %v302
      %v879 = vpop.permute.xlu0 %878
      %881 = vset.pattern.permute.xlu0 1
      %882 = vperm.xlu0 %881, %v303
      %v883 = vpop.permute.xlu0 %882
      %885 = vset.pattern.permute.xlu0 1
      %886 = vperm.xlu0 %885, %v304
      %v887 = vpop.permute.xlu0 %886
      %889 = vset.pattern.permute.xlu0 1
      %890 = vperm.xlu0 %889, %v305
      %v891 = vpop.permute.xlu0 %890
      %893 = vset.pattern.permute.xlu0 1
      %894 = vperm.xlu0 %893, %v306
      %v895 = vpop.permute.xlu0 %894
      %897 = vset.pattern.permute.xlu0 1
      %898 = vperm.xlu0 %897, %v307
      %v899 = vpop.permute.xlu0 %898
      %901 = vset.pattern.permute.xlu0 1
      %902 = vperm.xlu0 %901, %v308
      %v903 = vpop.permute.xlu0 %902
      %905 = vset.pattern.permute.xlu0 1
      %906 = vperm.xlu0 %905, %v309
      %v907 = vpop.permute.xlu0 %906
      %909 = vset.pattern.permute.xlu0 1
      %910 = vperm.xlu0 %909, %v310
      %v911 = vpop.permute.xlu0 %910
      %913 = vset.pattern.permute.xlu0 1
      %914 = vperm.xlu0 %913, %v311
      %v915 = vpop.permute.xlu0 %914
      %917 = vset.pattern.permute.xlu0 1
      %918 = vperm.xlu0 %917, %v312
      %v919 = vpop.permute.xlu0 %918
      %921 = vset.pattern.permute.xlu0 1
      %922 = vperm.xlu0 %921, %v313
      %v923 = vpop.permute.xlu0 %922
      %925 = vset.pattern.permute.xlu0 1
      %926 = vperm.xlu0 %925, %v314
      %v927 = vpop.permute.xlu0 %926
      %929 = vset.pattern.permute.xlu0 1
      %930 = vperm.xlu0 %929, %v315
      %v931 = vpop.permute.xlu0 %930
      %933 = vset.pattern.permute.xlu0 1
      %934 = vperm.xlu0 %933, %v316
      %v935 = vpop.permute.xlu0 %934
      %937 = vset.pattern.permute.xlu0 1
      %938 = vperm.xlu0 %937, %v317
      %v939 = vpop.permute.xlu0 %938
      %941 = vset.pattern.permute.xlu0 1
      %942 = vperm.xlu0 %941, %v318
      %v943 = vpop.permute.xlu0 %942
      %945 = vset.pattern.permute.xlu0 1
      %946 = vperm.xlu0 %945, %v319
      %v947 = vpop.permute.xlu0 %946
      %949 = vset.pattern.permute.xlu0 1
      %950 = vperm.xlu0 %949, %v320
      %v951 = vpop.permute.xlu0 %950
      %953 = vset.pattern.permute.xlu0 1
      %954 = vperm.xlu0 %953, %v321
      %v955 = vpop.permute.xlu0 %954
      %957 = vset.pattern.permute.xlu0 1
      %958 = vperm.xlu0 %957, %v322
      %v959 = vpop.permute.xlu0 %958
      %961 = vset.pattern.permute.xlu0 1
      %962 = vperm.xlu0 %961, %v323
      %v963 = vpop.permute.xlu0 %962
      %965 = vset.pattern.permute.xlu0 1
      %966 = vperm.xlu0 %965, %v324
      %v967 = vpop.permute.xlu0 %966
      %969 = vset.pattern.permute.xlu0 1
      %970 = vperm.xlu0 %969, %v325
      %v971 = vpop.permute.xlu0 %970
      %973 = vset.pattern.permute.xlu0 1
      %974 = vperm.xlu0 %973, %v326
      %v975 = vpop.permute.xlu0 %974
      %977 = vset.pattern.permute.xlu0 1
      %978 = vperm.xlu0 %977, %v327
      %v979 = vpop.permute.xlu0 %978
      %981 = vset.pattern.permute.xlu0 1
      %982 = vperm.xlu0 %981, %v328
      %v983 = vpop.permute.xlu0 %982
      %985 = vset.pattern.permute.xlu0 1
      %986 = vperm.xlu0 %985, %v329
      %v987 = vpop.permute.xlu0 %986
      %989 = vset.pattern.permute.xlu0 1
      %990 = vperm.xlu0 %989, %v330
      %v991 = vpop.permute.xlu0 %990
      %993 = vset.pattern.permute.xlu0 1
      %994 = vperm.xlu0 %993, %v331
      %v995 = vpop.permute.xlu0 %994
      %997 = vset.pattern.permute.xlu0 1
      %998 = vperm.xlu0 %997, %v332
      %v999 = vpop.permute.xlu0 %998
      %1001 = vset.pattern.permute.xlu0 1
      %1002 = vperm.xlu0 %1001, %v333
      %v1003 = vpop.permute.xlu0 %1002
      %1005 = vset.pattern.permute.xlu0 1
      %1006 = vperm.xlu0 %1005, %v334
      %v1007 = vpop.permute.xlu0 %1006
      %1009 = vset.pattern.permute.xlu0 1
      %1010 = vperm.xlu0 %1009, %v335
      %v1011 = vpop.permute.xlu0 %1010
      %1013 = vset.pattern.permute.xlu0 1
      %1014 = vperm.xlu0 %1013, %v336
      %v1015 = vpop.permute.xlu0 %1014
      %1017 = vset.pattern.permute.xlu0 1
      %1018 = vperm.xlu0 %1017, %v337
      %v1019 = vpop.permute.xlu0 %1018
      %1021 = vset.pattern.permute.xlu0 1
      %1022 = vperm.xlu0 %1021, %v338
      %v1023 = vpop.permute.xlu0 %1022
      %1025 = vset.pattern.permute.xlu0 1
      %1026 = vperm.xlu0 %1025, %v339
      %v1027 = vpop.permute.xlu0 %1026
      %1029 = vset.pattern.permute.xlu0 1
      %1030 = vperm.xlu0 %1029, %v340
      %v1031 = vpop.permute.xlu0 %1030
      %1033 = vset.pattern.permute.xlu0 1
      %1034 = vperm.xlu0 %1033, %v341
      %v1035 = vpop.permute.xlu0 %1034
      %1037 = vset.pattern.permute.xlu0 1
      %1038 = vperm.xlu0 %1037, %v342
      %v1039 = vpop.permute.xlu0 %1038
      %1041 = vset.pattern.permute.xlu0 1
      %1042 = vperm.xlu0 %1041, %v343
      %v1043 = vpop.permute.xlu0 %1042
      %1045 = vset.pattern.permute.xlu0 1
      %1046 = vperm.xlu0 %1045, %v344
      %v1047 = vpop.permute.xlu0 %1046
      %1049 = vset.pattern.permute.xlu0 1
      %1050 = vperm.xlu0 %1049, %v345
      %v1051 = vpop.permute.xlu0 %1050
      %1053 = vset.pattern.permute.xlu0 1
      %1054 = vperm.xlu0 %1053, %v346
      %v1055 = vpop.permute.xlu0 %1054
      %1057 = vset.pattern.permute.xlu0 1
      %1058 = vperm.xlu0 %1057, %v347
      %v1059 = vpop.permute.xlu0 %1058
      %1061 = vset.pattern.permute.xlu0 1
      %1062 = vperm.xlu0 %1061, %v348
      %v1063 = vpop.permute.xlu0 %1062
      %v1065 = vlaneseq
      %v1066 = vshrl.u32 %v1065, 7
      %v1067 = vsub.s32 1, %v1066
      %v1068 = vrot.slane %v349, %v1067
      %v1069 = vmul.f32 %v811, %v1068
      %v1070 = vmul.f32 %v815, %v1068
      %v1071 = vmul.f32 %v819, %v1068
      %v1072 = vmul.f32 %v823, %v1068
      %v1073 = vmul.f32 %v827, %v1068
      %v1074 = vmul.f32 %v831, %v1068
      %v1075 = vmul.f32 %v835, %v1068
      %v1076 = vmul.f32 %v839, %v1068
      %v1077 = vmul.f32 %v843, %v1068
      %v1078 = vmul.f32 %v847, %v1068
      %v1079 = vmul.f32 %v851, %v1068
      %v1080 = vmul.f32 %v855, %v1068
      %v1081 = vmul.f32 %v859, %v1068
      %v1082 = vmul.f32 %v863, %v1068
      %v1083 = vmul.f32 %v867, %v1068
      %v1084 = vmul.f32 %v871, %v1068
      %v1085 = vmul.f32 %v875, %v1068
      %v1086 = vmul.f32 %v879, %v1068
      %v1087 = vmul.f32 %v883, %v1068
      %v1088 = vmul.f32 %v887, %v1068
      %v1089 = vmul.f32 %v891, %v1068
      %v1090 = vmul.f32 %v895, %v1068
      %v1091 = vmul.f32 %v899, %v1068
      %v1092 = vmul.f32 %v903, %v1068
      %v1093 = vmul.f32 %v907, %v1068
      %v1094 = vmul.f32 %v911, %v1068
      %v1095 = vmul.f32 %v915, %v1068
      %v1096 = vmul.f32 %v919, %v1068
      %v1097 = vmul.f32 %v923, %v1068
      %v1098 = vmul.f32 %v927, %v1068
      %v1099 = vmul.f32 %v931, %v1068
      %v1100 = vmul.f32 %v935, %v1068
      %v1101 = vmul.f32 %v939, %v1068
      %v1102 = vmul.f32 %v943, %v1068
      %v1103 = vmul.f32 %v947, %v1068
      %v1104 = vmul.f32 %v951, %v1068
      %v1105 = vmul.f32 %v955, %v1068
      %v1106 = vmul.f32 %v959, %v1068
      %v1107 = vmul.f32 %v963, %v1068
      %v1108 = vmul.f32 %v967, %v1068
      %v1109 = vmul.f32 %v971, %v1068
      %v1110 = vmul.f32 %v975, %v1068
      %v1111 = vmul.f32 %v979, %v1068
      %v1112 = vmul.f32 %v983, %v1068
      %v1113 = vmul.f32 %v987, %v1068
      %v1114 = vmul.f32 %v991, %v1068
      %v1115 = vmul.f32 %v995, %v1068
      %v1116 = vmul.f32 %v999, %v1068
      %v1117 = vmul.f32 %v1003, %v1068
      %v1118 = vmul.f32 %v1007, %v1068
      %v1119 = vmul.f32 %v1011, %v1068
      %v1120 = vmul.f32 %v1015, %v1068
      %v1121 = vmul.f32 %v1019, %v1068
      %v1122 = vmul.f32 %v1023, %v1068
      %v1123 = vmul.f32 %v1027, %v1068
      %v1124 = vmul.f32 %v1031, %v1068
      %v1125 = vmul.f32 %v1035, %v1068
      %v1126 = vmul.f32 %v1039, %v1068
      %v1127 = vmul.f32 %v1043, %v1068
      %v1128 = vmul.f32 %v1047, %v1068
      %v1129 = vmul.f32 %v1051, %v1068
      %v1130 = vmul.f32 %v1055, %v1068
      %v1131 = vmul.f32 %v1059, %v1068
      %v1132 = vmul.f32 %v1063, %v1068
      %v1133 = vadd.f32 %v745, %v1069
      %v1134 = vadd.f32 %v746, %v1070
      %v1135 = vadd.f32 %v747, %v1071
      %v1136 = vadd.f32 %v748, %v1072
      %v1137 = vadd.f32 %v749, %v1073
      %v1138 = vadd.f32 %v750, %v1074
      %v1139 = vadd.f32 %v751, %v1075
      %v1140 = vadd.f32 %v752, %v1076
      %v1141 = vadd.f32 %v753, %v1077
      %v1142 = vadd.f32 %v754, %v1078
      %v1143 = vadd.f32 %v755, %v1079
      %v1144 = vadd.f32 %v756, %v1080
      %v1145 = vadd.f32 %v757, %v1081
      %v1146 = vadd.f32 %v758, %v1082
      %v1147 = vadd.f32 %v759, %v1083
      %v1148 = vadd.f32 %v760, %v1084
      %v1149 = vadd.f32 %v761, %v1085
      %v1150 = vadd.f32 %v762, %v1086
      %v1151 = vadd.f32 %v763, %v1087
      %v1152 = vadd.f32 %v764, %v1088
      %v1153 = vadd.f32 %v765, %v1089
      %v1154 = vadd.f32 %v766, %v1090
      %v1155 = vadd.f32 %v767, %v1091
      %v1156 = vadd.f32 %v768, %v1092
      %v1157 = vadd.f32 %v769, %v1093
      %v1158 = vadd.f32 %v770, %v1094
      %v1159 = vadd.f32 %v771, %v1095
      %v1160 = vadd.f32 %v772, %v1096
      %v1161 = vadd.f32 %v773, %v1097
      %v1162 = vadd.f32 %v774, %v1098
      %v1163 = vadd.f32 %v775, %v1099
      %v1164 = vadd.f32 %v776, %v1100
      %v1165 = vadd.f32 %v777, %v1101
      %v1166 = vadd.f32 %v778, %v1102
      %v1167 = vadd.f32 %v779, %v1103
      %v1168 = vadd.f32 %v780, %v1104
      %v1169 = vadd.f32 %v781, %v1105
      %v1170 = vadd.f32 %v782, %v1106
      %v1171 = vadd.f32 %v783, %v1107
      %v1172 = vadd.f32 %v784, %v1108
      %v1173 = vadd.f32 %v785, %v1109
      %v1174 = vadd.f32 %v786, %v1110
      %v1175 = vadd.f32 %v787, %v1111
      %v1176 = vadd.f32 %v788, %v1112
      %v1177 = vadd.f32 %v789, %v1113
      %v1178 = vadd.f32 %v790, %v1114
      %v1179 = vadd.f32 %v791, %v1115
      %v1180 = vadd.f32 %v792, %v1116
      %v1181 = vadd.f32 %v793, %v1117
      %v1182 = vadd.f32 %v794, %v1118
      %v1183 = vadd.f32 %v795, %v1119
      %v1184 = vadd.f32 %v796, %v1120
      %v1185 = vadd.f32 %v797, %v1121
      %v1186 = vadd.f32 %v798, %v1122
      %v1187 = vadd.f32 %v799, %v1123
      %v1188 = vadd.f32 %v800, %v1124
      %v1189 = vadd.f32 %v801, %v1125
      %v1190 = vadd.f32 %v802, %v1126
      %v1191 = vadd.f32 %v803, %v1127
      %v1192 = vadd.f32 %v804, %v1128
      %v1193 = vadd.f32 %v805, %v1129
      %v1194 = vadd.f32 %v806, %v1130
      %v1195 = vadd.f32 %v807, %v1131
      %v1196 = vadd.f32 %v808, %v1132
      %1197 = vset.pattern.permute.xlu0 2
      %1198 = vperm.xlu0 %1197, %v285
      %v1199 = vpop.permute.xlu0 %1198
      %1201 = vset.pattern.permute.xlu0 2
      %1202 = vperm.xlu0 %1201, %v286
      %v1203 = vpop.permute.xlu0 %1202
      %1205 = vset.pattern.permute.xlu0 2
      %1206 = vperm.xlu0 %1205, %v287
      %v1207 = vpop.permute.xlu0 %1206
      %1209 = vset.pattern.permute.xlu0 2
      %1210 = vperm.xlu0 %1209, %v288
      %v1211 = vpop.permute.xlu0 %1210
      %1213 = vset.pattern.permute.xlu0 2
      %1214 = vperm.xlu0 %1213, %v289
      %v1215 = vpop.permute.xlu0 %1214
      %1217 = vset.pattern.permute.xlu0 2
      %1218 = vperm.xlu0 %1217, %v290
      %v1219 = vpop.permute.xlu0 %1218
      %1221 = vset.pattern.permute.xlu0 2
      %1222 = vperm.xlu0 %1221, %v291
      %v1223 = vpop.permute.xlu0 %1222
      %1225 = vset.pattern.permute.xlu0 2
      %1226 = vperm.xlu0 %1225, %v292
      %v1227 = vpop.permute.xlu0 %1226
      %1229 = vset.pattern.permute.xlu0 2
      %1230 = vperm.xlu0 %1229, %v293
      %v1231 = vpop.permute.xlu0 %1230
      %1233 = vset.pattern.permute.xlu0 2
      %1234 = vperm.xlu0 %1233, %v294
      %v1235 = vpop.permute.xlu0 %1234
      %1237 = vset.pattern.permute.xlu0 2
      %1238 = vperm.xlu0 %1237, %v295
      %v1239 = vpop.permute.xlu0 %1238
      %1241 = vset.pattern.permute.xlu0 2
      %1242 = vperm.xlu0 %1241, %v296
      %v1243 = vpop.permute.xlu0 %1242
      %1245 = vset.pattern.permute.xlu0 2
      %1246 = vperm.xlu0 %1245, %v297
      %v1247 = vpop.permute.xlu0 %1246
      %1249 = vset.pattern.permute.xlu0 2
      %1250 = vperm.xlu0 %1249, %v298
      %v1251 = vpop.permute.xlu0 %1250
      %1253 = vset.pattern.permute.xlu0 2
      %1254 = vperm.xlu0 %1253, %v299
      %v1255 = vpop.permute.xlu0 %1254
      %1257 = vset.pattern.permute.xlu0 2
      %1258 = vperm.xlu0 %1257, %v300
      %v1259 = vpop.permute.xlu0 %1258
      %1261 = vset.pattern.permute.xlu0 2
      %1262 = vperm.xlu0 %1261, %v301
      %v1263 = vpop.permute.xlu0 %1262
      %1265 = vset.pattern.permute.xlu0 2
      %1266 = vperm.xlu0 %1265, %v302
      %v1267 = vpop.permute.xlu0 %1266
      %1269 = vset.pattern.permute.xlu0 2
      %1270 = vperm.xlu0 %1269, %v303
      %v1271 = vpop.permute.xlu0 %1270
      %1273 = vset.pattern.permute.xlu0 2
      %1274 = vperm.xlu0 %1273, %v304
      %v1275 = vpop.permute.xlu0 %1274
      %1277 = vset.pattern.permute.xlu0 2
      %1278 = vperm.xlu0 %1277, %v305
      %v1279 = vpop.permute.xlu0 %1278
      %1281 = vset.pattern.permute.xlu0 2
      %1282 = vperm.xlu0 %1281, %v306
      %v1283 = vpop.permute.xlu0 %1282
      %1285 = vset.pattern.permute.xlu0 2
      %1286 = vperm.xlu0 %1285, %v307
      %v1287 = vpop.permute.xlu0 %1286
      %1289 = vset.pattern.permute.xlu0 2
      %1290 = vperm.xlu0 %1289, %v308
      %v1291 = vpop.permute.xlu0 %1290
      %1293 = vset.pattern.permute.xlu0 2
      %1294 = vperm.xlu0 %1293, %v309
      %v1295 = vpop.permute.xlu0 %1294
      %1297 = vset.pattern.permute.xlu0 2
      %1298 = vperm.xlu0 %1297, %v310
      %v1299 = vpop.permute.xlu0 %1298
      %1301 = vset.pattern.permute.xlu0 2
      %1302 = vperm.xlu0 %1301, %v311
      %v1303 = vpop.permute.xlu0 %1302
      %1305 = vset.pattern.permute.xlu0 2
      %1306 = vperm.xlu0 %1305, %v312
      %v1307 = vpop.permute.xlu0 %1306
      %1309 = vset.pattern.permute.xlu0 2
      %1310 = vperm.xlu0 %1309, %v313
      %v1311 = vpop.permute.xlu0 %1310
      %1313 = vset.pattern.permute.xlu0 2
      %1314 = vperm.xlu0 %1313, %v314
      %v1315 = vpop.permute.xlu0 %1314
      %1317 = vset.pattern.permute.xlu0 2
      %1318 = vperm.xlu0 %1317, %v315
      %v1319 = vpop.permute.xlu0 %1318
      %1321 = vset.pattern.permute.xlu0 2
      %1322 = vperm.xlu0 %1321, %v316
      %v1323 = vpop.permute.xlu0 %1322
      %1325 = vset.pattern.permute.xlu0 2
      %1326 = vperm.xlu0 %1325, %v317
      %v1327 = vpop.permute.xlu0 %1326
      %1329 = vset.pattern.permute.xlu0 2
      %1330 = vperm.xlu0 %1329, %v318
      %v1331 = vpop.permute.xlu0 %1330
      %1333 = vset.pattern.permute.xlu0 2
      %1334 = vperm.xlu0 %1333, %v319
      %v1335 = vpop.permute.xlu0 %1334
      %1337 = vset.pattern.permute.xlu0 2
      %1338 = vperm.xlu0 %1337, %v320
      %v1339 = vpop.permute.xlu0 %1338
      %1341 = vset.pattern.permute.xlu0 2
      %1342 = vperm.xlu0 %1341, %v321
      %v1343 = vpop.permute.xlu0 %1342
      %1345 = vset.pattern.permute.xlu0 2
      %1346 = vperm.xlu0 %1345, %v322
      %v1347 = vpop.permute.xlu0 %1346
      %1349 = vset.pattern.permute.xlu0 2
      %1350 = vperm.xlu0 %1349, %v323
      %v1351 = vpop.permute.xlu0 %1350
      %1353 = vset.pattern.permute.xlu0 2
      %1354 = vperm.xlu0 %1353, %v324
      %v1355 = vpop.permute.xlu0 %1354
      %1357 = vset.pattern.permute.xlu0 2
      %1358 = vperm.xlu0 %1357, %v325
      %v1359 = vpop.permute.xlu0 %1358
      %1361 = vset.pattern.permute.xlu0 2
      %1362 = vperm.xlu0 %1361, %v326
      %v1363 = vpop.permute.xlu0 %1362
      %1365 = vset.pattern.permute.xlu0 2
      %1366 = vperm.xlu0 %1365, %v327
      %v1367 = vpop.permute.xlu0 %1366
      %1369 = vset.pattern.permute.xlu0 2
      %1370 = vperm.xlu0 %1369, %v328
      %v1371 = vpop.permute.xlu0 %1370
      %1373 = vset.pattern.permute.xlu0 2
      %1374 = vperm.xlu0 %1373, %v329
      %v1375 = vpop.permute.xlu0 %1374
      %1377 = vset.pattern.permute.xlu0 2
      %1378 = vperm.xlu0 %1377, %v330
      %v1379 = vpop.permute.xlu0 %1378
      %1381 = vset.pattern.permute.xlu0 2
      %1382 = vperm.xlu0 %1381, %v331
      %v1383 = vpop.permute.xlu0 %1382
      %1385 = vset.pattern.permute.xlu0 2
      %1386 = vperm.xlu0 %1385, %v332
      %v1387 = vpop.permute.xlu0 %1386
      %1389 = vset.pattern.permute.xlu0 2
      %1390 = vperm.xlu0 %1389, %v333
      %v1391 = vpop.permute.xlu0 %1390
      %1393 = vset.pattern.permute.xlu0 2
      %1394 = vperm.xlu0 %1393, %v334
      %v1395 = vpop.permute.xlu0 %1394
      %1397 = vset.pattern.permute.xlu0 2
      %1398 = vperm.xlu0 %1397, %v335
      %v1399 = vpop.permute.xlu0 %1398
      %1401 = vset.pattern.permute.xlu0 2
      %1402 = vperm.xlu0 %1401, %v336
      %v1403 = vpop.permute.xlu0 %1402
      %1405 = vset.pattern.permute.xlu0 2
      %1406 = vperm.xlu0 %1405, %v337
      %v1407 = vpop.permute.xlu0 %1406
      %1409 = vset.pattern.permute.xlu0 2
      %1410 = vperm.xlu0 %1409, %v338
      %v1411 = vpop.permute.xlu0 %1410
      %1413 = vset.pattern.permute.xlu0 2
      %1414 = vperm.xlu0 %1413, %v339
      %v1415 = vpop.permute.xlu0 %1414
      %1417 = vset.pattern.permute.xlu0 2
      %1418 = vperm.xlu0 %1417, %v340
      %v1419 = vpop.permute.xlu0 %1418
      %1421 = vset.pattern.permute.xlu0 2
      %1422 = vperm.xlu0 %1421, %v341
      %v1423 = vpop.permute.xlu0 %1422
      %1425 = vset.pattern.permute.xlu0 2
      %1426 = vperm.xlu0 %1425, %v342
      %v1427 = vpop.permute.xlu0 %1426
      %1429 = vset.pattern.permute.xlu0 2
      %1430 = vperm.xlu0 %1429, %v343
      %v1431 = vpop.permute.xlu0 %1430
      %1433 = vset.pattern.permute.xlu0 2
      %1434 = vperm.xlu0 %1433, %v344
      %v1435 = vpop.permute.xlu0 %1434
      %1437 = vset.pattern.permute.xlu0 2
      %1438 = vperm.xlu0 %1437, %v345
      %v1439 = vpop.permute.xlu0 %1438
      %1441 = vset.pattern.permute.xlu0 2
      %1442 = vperm.xlu0 %1441, %v346
      %v1443 = vpop.permute.xlu0 %1442
      %1445 = vset.pattern.permute.xlu0 2
      %1446 = vperm.xlu0 %1445, %v347
      %v1447 = vpop.permute.xlu0 %1446
      %1449 = vset.pattern.permute.xlu0 2
      %1450 = vperm.xlu0 %1449, %v348
      %v1451 = vpop.permute.xlu0 %1450
      %v1453 = vlaneseq
      %v1454 = vshrl.u32 %v1453, 7
      %v1455 = vsub.s32 2, %v1454
      %v1456 = vrot.slane %v349, %v1455
      %v1457 = vmul.f32 %v1199, %v1456
      %v1458 = vmul.f32 %v1203, %v1456
      %v1459 = vmul.f32 %v1207, %v1456
      %v1460 = vmul.f32 %v1211, %v1456
      %v1461 = vmul.f32 %v1215, %v1456
      %v1462 = vmul.f32 %v1219, %v1456
      %v1463 = vmul.f32 %v1223, %v1456
      %v1464 = vmul.f32 %v1227, %v1456
      %v1465 = vmul.f32 %v1231, %v1456
      %v1466 = vmul.f32 %v1235, %v1456
      %v1467 = vmul.f32 %v1239, %v1456
      %v1468 = vmul.f32 %v1243, %v1456
      %v1469 = vmul.f32 %v1247, %v1456
      %v1470 = vmul.f32 %v1251, %v1456
      %v1471 = vmul.f32 %v1255, %v1456
      %v1472 = vmul.f32 %v1259, %v1456
      %v1473 = vmul.f32 %v1263, %v1456
      %v1474 = vmul.f32 %v1267, %v1456
      %v1475 = vmul.f32 %v1271, %v1456
      %v1476 = vmul.f32 %v1275, %v1456
      %v1477 = vmul.f32 %v1279, %v1456
      %v1478 = vmul.f32 %v1283, %v1456
      %v1479 = vmul.f32 %v1287, %v1456
      %v1480 = vmul.f32 %v1291, %v1456
      %v1481 = vmul.f32 %v1295, %v1456
      %v1482 = vmul.f32 %v1299, %v1456
      %v1483 = vmul.f32 %v1303, %v1456
      %v1484 = vmul.f32 %v1307, %v1456
      %v1485 = vmul.f32 %v1311, %v1456
      %v1486 = vmul.f32 %v1315, %v1456
      %v1487 = vmul.f32 %v1319, %v1456
      %v1488 = vmul.f32 %v1323, %v1456
      %v1489 = vmul.f32 %v1327, %v1456
      %v1490 = vmul.f32 %v1331, %v1456
      %v1491 = vmul.f32 %v1335, %v1456
      %v1492 = vmul.f32 %v1339, %v1456
      %v1493 = vmul.f32 %v1343, %v1456
      %v1494 = vmul.f32 %v1347, %v1456
      %v1495 = vmul.f32 %v1351, %v1456
      %v1496 = vmul.f32 %v1355, %v1456
      %v1497 = vmul.f32 %v1359, %v1456
      %v1498 = vmul.f32 %v1363, %v1456
      %v1499 = vmul.f32 %v1367, %v1456
      %v1500 = vmul.f32 %v1371, %v1456
      %v1501 = vmul.f32 %v1375, %v1456
      %v1502 = vmul.f32 %v1379, %v1456
      %v1503 = vmul.f32 %v1383, %v1456
      %v1504 = vmul.f32 %v1387, %v1456
      %v1505 = vmul.f32 %v1391, %v1456
      %v1506 = vmul.f32 %v1395, %v1456
      %v1507 = vmul.f32 %v1399, %v1456
      %v1508 = vmul.f32 %v1403, %v1456
      %v1509 = vmul.f32 %v1407, %v1456
      %v1510 = vmul.f32 %v1411, %v1456
      %v1511 = vmul.f32 %v1415, %v1456
      %v1512 = vmul.f32 %v1419, %v1456
      %v1513 = vmul.f32 %v1423, %v1456
      %v1514 = vmul.f32 %v1427, %v1456
      %v1515 = vmul.f32 %v1431, %v1456
      %v1516 = vmul.f32 %v1435, %v1456
      %v1517 = vmul.f32 %v1439, %v1456
      %v1518 = vmul.f32 %v1443, %v1456
      %v1519 = vmul.f32 %v1447, %v1456
      %v1520 = vmul.f32 %v1451, %v1456
      %v1521 = vadd.f32 %v1133, %v1457
      %v1522 = vadd.f32 %v1134, %v1458
      %v1523 = vadd.f32 %v1135, %v1459
      %v1524 = vadd.f32 %v1136, %v1460
      %v1525 = vadd.f32 %v1137, %v1461
      %v1526 = vadd.f32 %v1138, %v1462
      %v1527 = vadd.f32 %v1139, %v1463
      %v1528 = vadd.f32 %v1140, %v1464
      %v1529 = vadd.f32 %v1141, %v1465
      %v1530 = vadd.f32 %v1142, %v1466
      %v1531 = vadd.f32 %v1143, %v1467
      %v1532 = vadd.f32 %v1144, %v1468
      %v1533 = vadd.f32 %v1145, %v1469
      %v1534 = vadd.f32 %v1146, %v1470
      %v1535 = vadd.f32 %v1147, %v1471
      %v1536 = vadd.f32 %v1148, %v1472
      %v1537 = vadd.f32 %v1149, %v1473
      %v1538 = vadd.f32 %v1150, %v1474
      %v1539 = vadd.f32 %v1151, %v1475
      %v1540 = vadd.f32 %v1152, %v1476
      %v1541 = vadd.f32 %v1153, %v1477
      %v1542 = vadd.f32 %v1154, %v1478
      %v1543 = vadd.f32 %v1155, %v1479
      %v1544 = vadd.f32 %v1156, %v1480
      %v1545 = vadd.f32 %v1157, %v1481
      %v1546 = vadd.f32 %v1158, %v1482
      %v1547 = vadd.f32 %v1159, %v1483
      %v1548 = vadd.f32 %v1160, %v1484
      %v1549 = vadd.f32 %v1161, %v1485
      %v1550 = vadd.f32 %v1162, %v1486
      %v1551 = vadd.f32 %v1163, %v1487
      %v1552 = vadd.f32 %v1164, %v1488
      %v1553 = vadd.f32 %v1165, %v1489
      %v1554 = vadd.f32 %v1166, %v1490
      %v1555 = vadd.f32 %v1167, %v1491
      %v1556 = vadd.f32 %v1168, %v1492
      %v1557 = vadd.f32 %v1169, %v1493
      %v1558 = vadd.f32 %v1170, %v1494
      %v1559 = vadd.f32 %v1171, %v1495
      %v1560 = vadd.f32 %v1172, %v1496
      %v1561 = vadd.f32 %v1173, %v1497
      %v1562 = vadd.f32 %v1174, %v1498
      %v1563 = vadd.f32 %v1175, %v1499
      %v1564 = vadd.f32 %v1176, %v1500
      %v1565 = vadd.f32 %v1177, %v1501
      %v1566 = vadd.f32 %v1178, %v1502
      %v1567 = vadd.f32 %v1179, %v1503
      %v1568 = vadd.f32 %v1180, %v1504
      %v1569 = vadd.f32 %v1181, %v1505
      %v1570 = vadd.f32 %v1182, %v1506
      %v1571 = vadd.f32 %v1183, %v1507
      %v1572 = vadd.f32 %v1184, %v1508
      %v1573 = vadd.f32 %v1185, %v1509
      %v1574 = vadd.f32 %v1186, %v1510
      %v1575 = vadd.f32 %v1187, %v1511
      %v1576 = vadd.f32 %v1188, %v1512
      %v1577 = vadd.f32 %v1189, %v1513
      %v1578 = vadd.f32 %v1190, %v1514
      %v1579 = vadd.f32 %v1191, %v1515
      %v1580 = vadd.f32 %v1192, %v1516
      %v1581 = vadd.f32 %v1193, %v1517
      %v1582 = vadd.f32 %v1194, %v1518
      %v1583 = vadd.f32 %v1195, %v1519
      %v1584 = vadd.f32 %v1196, %v1520
      %v1585 = vmax.f32 %v1521, 0.0
      %v1586 = vmax.f32 %v1522, 0.0
      %v1587 = vmax.f32 %v1523, 0.0
      %v1588 = vmax.f32 %v1524, 0.0
      %v1589 = vmax.f32 %v1525, 0.0
      %v1590 = vmax.f32 %v1526, 0.0
      %v1591 = vmax.f32 %v1527, 0.0
      %v1592 = vmax.f32 %v1528, 0.0
      %v1593 = vmax.f32 %v1529, 0.0
      %v1594 = vmax.f32 %v1530, 0.0
      %v1595 = vmax.f32 %v1531, 0.0
      %v1596 = vmax.f32 %v1532, 0.0
      %v1597 = vmax.f32 %v1533, 0.0
      %v1598 = vmax.f32 %v1534, 0.0
      %v1599 = vmax.f32 %v1535, 0.0
      %v1600 = vmax.f32 %v1536, 0.0
      %v1601 = vmax.f32 %v1537, 0.0
      %v1602 = vmax.f32 %v1538, 0.0
      %v1603 = vmax.f32 %v1539, 0.0
      %v1604 = vmax.f32 %v1540, 0.0
      %v1605 = vmax.f32 %v1541, 0.0
      %v1606 = vmax.f32 %v1542, 0.0
      %v1607 = vmax.f32 %v1543, 0.0
      %v1608 = vmax.f32 %v1544, 0.0
      %v1609 = vmax.f32 %v1545, 0.0
      %v1610 = vmax.f32 %v1546, 0.0
      %v1611 = vmax.f32 %v1547, 0.0
      %v1612 = vmax.f32 %v1548, 0.0
      %v1613 = vmax.f32 %v1549, 0.0
      %v1614 = vmax.f32 %v1550, 0.0
      %v1615 = vmax.f32 %v1551, 0.0
      %v1616 = vmax.f32 %v1552, 0.0
      %v1617 = vmax.f32 %v1553, 0.0
      %v1618 = vmax.f32 %v1554, 0.0
      %v1619 = vmax.f32 %v1555, 0.0
      %v1620 = vmax.f32 %v1556, 0.0
      %v1621 = vmax.f32 %v1557, 0.0
      %v1622 = vmax.f32 %v1558, 0.0
      %v1623 = vmax.f32 %v1559, 0.0
      %v1624 = vmax.f32 %v1560, 0.0
      %v1625 = vmax.f32 %v1561, 0.0
      %v1626 = vmax.f32 %v1562, 0.0
      %v1627 = vmax.f32 %v1563, 0.0
      %v1628 = vmax.f32 %v1564, 0.0
      %v1629 = vmax.f32 %v1565, 0.0
      %v1630 = vmax.f32 %v1566, 0.0
      %v1631 = vmax.f32 %v1567, 0.0
      %v1632 = vmax.f32 %v1568, 0.0
      %v1633 = vmax.f32 %v1569, 0.0
      %v1634 = vmax.f32 %v1570, 0.0
      %v1635 = vmax.f32 %v1571, 0.0
      %v1636 = vmax.f32 %v1572, 0.0
      %v1637 = vmax.f32 %v1573, 0.0
      %v1638 = vmax.f32 %v1574, 0.0
      %v1639 = vmax.f32 %v1575, 0.0
      %v1640 = vmax.f32 %v1576, 0.0
      %v1641 = vmax.f32 %v1577, 0.0
      %v1642 = vmax.f32 %v1578, 0.0
      %v1643 = vmax.f32 %v1579, 0.0
      %v1644 = vmax.f32 %v1580, 0.0
      %v1645 = vmax.f32 %v1581, 0.0
      %v1646 = vmax.f32 %v1582, 0.0
      %v1647 = vmax.f32 %v1583, 0.0
      %v1648 = vmax.f32 %v1584, 0.0
      %v1649 = vpack.c.bf16 %v1586, %v1585
      %v1650 = vpack.c.bf16 %v1588, %v1587
      %v1651 = vpack.c.bf16 %v1590, %v1589
      %v1652 = vpack.c.bf16 %v1592, %v1591
      %v1653 = vpack.c.bf16 %v1594, %v1593
      %v1654 = vpack.c.bf16 %v1596, %v1595
      %v1655 = vpack.c.bf16 %v1598, %v1597
      %v1656 = vpack.c.bf16 %v1600, %v1599
      %v1657 = vpack.c.bf16 %v1602, %v1601
      %v1658 = vpack.c.bf16 %v1604, %v1603
      %v1659 = vpack.c.bf16 %v1606, %v1605
      %v1660 = vpack.c.bf16 %v1608, %v1607
      %v1661 = vpack.c.bf16 %v1610, %v1609
      %v1662 = vpack.c.bf16 %v1612, %v1611
      %v1663 = vpack.c.bf16 %v1614, %v1613
      %v1664 = vpack.c.bf16 %v1616, %v1615
      %v1665 = vpack.c.bf16 %v1618, %v1617
      %v1666 = vpack.c.bf16 %v1620, %v1619
      %v1667 = vpack.c.bf16 %v1622, %v1621
      %v1668 = vpack.c.bf16 %v1624, %v1623
      %v1669 = vpack.c.bf16 %v1626, %v1625
      %v1670 = vpack.c.bf16 %v1628, %v1627
      %v1671 = vpack.c.bf16 %v1630, %v1629
      %v1672 = vpack.c.bf16 %v1632, %v1631
      %v1673 = vpack.c.bf16 %v1634, %v1633
      %v1674 = vpack.c.bf16 %v1636, %v1635
      %v1675 = vpack.c.bf16 %v1638, %v1637
      %v1676 = vpack.c.bf16 %v1640, %v1639
      %v1677 = vpack.c.bf16 %v1642, %v1641
      %v1678 = vpack.c.bf16 %v1644, %v1643
      %v1679 = vpack.c.bf16 %v1646, %v1645
      %v1680 = vpack.c.bf16 %v1648, %v1647
      %v1681 = vld [vmem:[%s3] sm:$0xf]
      %v1682 = vld [vmem:[%s3 + $0x4] sm:$0xf]
      %v1683 = vld [vmem:[%s3 + $0x8] sm:$0xf]
      %v1684 = vld [vmem:[%s3 + $0xc] sm:$0xf]
      %v1685 = vld [vmem:[%s3 + $0x10] sm:$0xf]
      %v1686 = vld [vmem:[%s3 + $0x14] sm:$0xf]
      %v1687 = vld [vmem:[%s3 + $0x18] sm:$0xf]
      %v1688 = vld [vmem:[%s3 + $0x1c] sm:$0xf]
      %v1689 = vld [vmem:[%s3 + $0x20] sm:$0xf]
      %v1690 = vld [vmem:[%s3 + $0x24] sm:$0xf]
      %v1691 = vld [vmem:[%s3 + $0x28] sm:$0xf]
      %v1692 = vld [vmem:[%s3 + $0x2c] sm:$0xf]
      %v1693 = vld [vmem:[%s3 + $0x30] sm:$0xf]
      %v1694 = vld [vmem:[%s3 + $0x34] sm:$0xf]
      %v1695 = vld [vmem:[%s3 + $0x38] sm:$0xf]
      %v1696 = vld [vmem:[%s3 + $0x3c] sm:$0xf]
      %v1697 = vld [vmem:[%s4] sm:$0x1]
      %v1699 = vlaneseq
      %v1700 = vshrl.u32 %v1699, 7
      %v1701 = vsub.s32 0, %v1700
      %v1702 = vrot.slane %v1697, %v1701
      %v1720 = vunpack.c.l.b16 %v1681
      %v1721 = vunpack.c.l.b16 %v1682
      %v1722 = vunpack.c.l.b16 %v1683
      %v1723 = vunpack.c.l.b16 %v1684
      %v1724 = vunpack.c.l.b16 %v1685
      %v1725 = vunpack.c.l.b16 %v1686
      %v1726 = vunpack.c.l.b16 %v1687
      %v1727 = vunpack.c.l.b16 %v1688
      %v1728 = vunpack.c.l.b16 %v1689
      %v1729 = vunpack.c.l.b16 %v1690
      %v1730 = vunpack.c.l.b16 %v1691
      %v1731 = vunpack.c.l.b16 %v1692
      %v1732 = vunpack.c.l.b16 %v1693
      %v1733 = vunpack.c.l.b16 %v1694
      %v1734 = vunpack.c.l.b16 %v1695
      %v1735 = vunpack.c.l.b16 %v1696
      %v1736 = vpack.c.b16 %v1721, %v1720
      %v1737 = vpack.c.b16 %v1723, %v1722
      %v1738 = vpack.c.b16 %v1725, %v1724
      %v1739 = vpack.c.b16 %v1727, %v1726
      %v1740 = vpack.c.b16 %v1729, %v1728
      %v1741 = vpack.c.b16 %v1731, %v1730
      %v1742 = vpack.c.b16 %v1733, %v1732
      %v1743 = vpack.c.b16 %v1735, %v1734
      %1752 = vmatprep.subr.bf16.mxu0 0
      %1753 = vmatpush1.bf16.msra.mxu0 %v1736
      %1754 = vmatprep.subr.bf16.mxu0 0
      %1755 = vmatpush1.bf16.msra.mxu0 %v1737
      %1756 = vmatprep.subr.bf16.mxu0 0
      %1757 = vmatpush1.bf16.msra.mxu0 %v1738
      %1758 = vmatprep.subr.bf16.mxu0 0
      %1759 = vmatpush1.bf16.msra.mxu0 %v1739
      %1760 = vmatprep.subr.bf16.mxu0 0
      %1761 = vmatpush1.bf16.msra.mxu0 %v1740
      %1762 = vmatprep.subr.bf16.mxu0 0
      %1763 = vmatpush1.bf16.msra.mxu0 %v1741
      %1764 = vmatprep.subr.bf16.mxu0 0
      %1765 = vmatpush1.bf16.msra.mxu0 %v1742
      %1766 = vmatprep.subr.bf16.mxu0 0
      %1767 = vmatpush1.bf16.msra.mxu0 %v1743
      %1768 = vmatprep.subr.bf16.mxu0 0
      %1769 = vmatpush1.bf16.msra.mxu0 0
      %1770 = vmatprep.subr.bf16.mxu0 0
      %1771 = vmatpush1.bf16.msra.mxu0 0
      %1772 = vmatprep.subr.bf16.mxu0 0
      %1773 = vmatpush1.bf16.msra.mxu0 0
      %1774 = vmatprep.subr.bf16.mxu0 0
      %1775 = vmatpush1.bf16.msra.mxu0 0
      %1776 = vmatprep.subr.bf16.mxu0 0
      %1777 = vmatpush1.bf16.msra.mxu0 0
      %1778 = vmatprep.subr.bf16.mxu0 0
      %1779 = vmatpush1.bf16.msra.mxu0 0
      %1780 = vmatprep.subr.bf16.mxu0 0
      %1781 = vmatpush1.bf16.msra.mxu0 0
      %1782 = vmatprep.subr.bf16.mxu0 0
      %1783 = vmatpush1.bf16.msra.mxu0 0
      %1784 = vmatprep.mubr.bf16.mxu0 0
      %1785 = vmatmul.mubr.bf16.gmra.mrb[0].mxu0 %v1649
      %v1786 = vpop.f32.mrb[0].mxu0
      %v1787 = vadd.f32 %v1702, %v1786
      %v1788 = vpop.f32.mrb[0].mxu0
      %v1789 = vpop.f32.mrb[0].mxu0
      %v1790 = vadd.f32 %v1702, %v1789
      %v1791 = vpop.f32.mrb[0].mxu0
      %1792 = vmatprep.mubr.bf16.mxu0 0
      %1793 = vmatmul.mubr.bf16.gmra.mrb[0].mxu0 %v1650
      %v1794 = vpop.f32.mrb[0].mxu0
      %v1795 = vadd.f32 %v1702, %v1794
      %v1796 = vpop.f32.mrb[0].mxu0
      %v1797 = vpop.f32.mrb[0].mxu0
      %v1798 = vadd.f32 %v1702, %v1797
      %v1799 = vpop.f32.mrb[0].mxu0
      %1800 = vmatprep.mubr.bf16.mxu0 0
      %1801 = vmatmul.mubr.bf16.gmra.mrb[0].mxu0 %v1651
      %v1802 = vpop.f32.mrb[0].mxu0
      %v1803 = vadd.f32 %v1702, %v1802
      %v1804 = vpop.f32.mrb[0].mxu0
      %v1805 = vpop.f32.mrb[0].mxu0
      %v1806 = vadd.f32 %v1702, %v1805
      %v1807 = vpop.f32.mrb[0].mxu0
      %1808 = vmatprep.mubr.bf16.mxu0 0
      %1809 = vmatmul.mubr.bf16.gmra.mrb[0].mxu0 %v1652
      %v1810 = vpop.f32.mrb[0].mxu0
      %v1811 = vadd.f32 %v1702, %v1810
      %v1812 = vpop.f32.mrb[0].mxu0
      %v1813 = vpop.f32.mrb[0].mxu0
      %v1814 = vadd.f32 %v1702, %v1813
      %v1815 = vpop.f32.mrb[0].mxu0
      %1816 = vmatprep.mubr.bf16.mxu0 0
      %1817 = vmatmul.mubr.bf16.gmra.mrb[0].mxu0 %v1653
      %v1818 = vpop.f32.mrb[0].mxu0
      %v1819 = vadd.f32 %v1702, %v1818
      %v1820 = vpop.f32.mrb[0].mxu0
      %v1821 = vpop.f32.mrb[0].mxu0
      %v1822 = vadd.f32 %v1702, %v1821
      %v1823 = vpop.f32.mrb[0].mxu0
      %1824 = vmatprep.mubr.bf16.mxu0 0
      %1825 = vmatmul.mubr.bf16.gmra.mrb[0].mxu0 %v1654
      %v1826 = vpop.f32.mrb[0].mxu0
      %v1827 = vadd.f32 %v1702, %v1826
      %v1828 = vpop.f32.mrb[0].mxu0
      %v1829 = vpop.f32.mrb[0].mxu0
      %v1830 = vadd.f32 %v1702, %v1829
      %v1831 = vpop.f32.mrb[0].mxu0
      %1832 = vmatprep.mubr.bf16.mxu0 0
      %1833 = vmatmul.mubr.bf16.gmra.mrb[0].mxu0 %v1655
      %v1834 = vpop.f32.mrb[0].mxu0
      %v1835 = vadd.f32 %v1702, %v1834
      %v1836 = vpop.f32.mrb[0].mxu0
      %v1837 = vpop.f32.mrb[0].mxu0
      %v1838 = vadd.f32 %v1702, %v1837
      %v1839 = vpop.f32.mrb[0].mxu0
      %1840 = vmatprep.mubr.bf16.mxu0 0
      %1841 = vmatmul.mubr.bf16.gmra.mrb[0].mxu0 %v1656
      %v1842 = vpop.f32.mrb[0].mxu0
      %v1843 = vadd.f32 %v1702, %v1842
      %v1844 = vpop.f32.mrb[0].mxu0
      %v1845 = vpop.f32.mrb[0].mxu0
      %v1846 = vadd.f32 %v1702, %v1845
      %v1847 = vpop.f32.mrb[0].mxu0
      %1848 = vmatprep.mubr.bf16.mxu0 0
      %1849 = vmatmul.mubr.bf16.gmra.mrb[0].mxu0 %v1657
      %v1850 = vpop.f32.mrb[0].mxu0
      %v1851 = vadd.f32 %v1702, %v1850
      %v1852 = vpop.f32.mrb[0].mxu0
      %v1853 = vpop.f32.mrb[0].mxu0
      %v1854 = vadd.f32 %v1702, %v1853
      %v1855 = vpop.f32.mrb[0].mxu0
      %1856 = vmatprep.mubr.bf16.mxu0 0
      %1857 = vmatmul.mubr.bf16.gmra.mrb[0].mxu0 %v1658
      %v1858 = vpop.f32.mrb[0].mxu0
      %v1859 = vadd.f32 %v1702, %v1858
      %v1860 = vpop.f32.mrb[0].mxu0
      %v1861 = vpop.f32.mrb[0].mxu0
      %v1862 = vadd.f32 %v1702, %v1861
      %v1863 = vpop.f32.mrb[0].mxu0
      %1864 = vmatprep.mubr.bf16.mxu0 0
      %1865 = vmatmul.mubr.bf16.gmra.mrb[0].mxu0 %v1659
      %v1866 = vpop.f32.mrb[0].mxu0
      %v1867 = vadd.f32 %v1702, %v1866
      %v1868 = vpop.f32.mrb[0].mxu0
      %v1869 = vpop.f32.mrb[0].mxu0
      %v1870 = vadd.f32 %v1702, %v1869
      %v1871 = vpop.f32.mrb[0].mxu0
      %1872 = vmatprep.mubr.bf16.mxu0 0
      %1873 = vmatmul.mubr.bf16.gmra.mrb[0].mxu0 %v1660
      %v1874 = vpop.f32.mrb[0].mxu0
      %v1875 = vadd.f32 %v1702, %v1874
      %v1876 = vpop.f32.mrb[0].mxu0
      %v1877 = vpop.f32.mrb[0].mxu0
      %v1878 = vadd.f32 %v1702, %v1877
      %v1879 = vpop.f32.mrb[0].mxu0
      %1880 = vmatprep.mubr.bf16.mxu0 0
      %1881 = vmatmul.mubr.bf16.gmra.mrb[0].mxu0 %v1661
      %v1882 = vpop.f32.mrb[0].mxu0
      %v1883 = vadd.f32 %v1702, %v1882
      %v1884 = vpop.f32.mrb[0].mxu0
      %v1885 = vpop.f32.mrb[0].mxu0
      %v1886 = vadd.f32 %v1702, %v1885
      %v1887 = vpop.f32.mrb[0].mxu0
      %1888 = vmatprep.mubr.bf16.mxu0 0
      %1889 = vmatmul.mubr.bf16.gmra.mrb[0].mxu0 %v1662
      %v1890 = vpop.f32.mrb[0].mxu0
      %v1891 = vadd.f32 %v1702, %v1890
      %v1892 = vpop.f32.mrb[0].mxu0
      %v1893 = vpop.f32.mrb[0].mxu0
      %v1894 = vadd.f32 %v1702, %v1893
      %v1895 = vpop.f32.mrb[0].mxu0
      %1896 = vmatprep.mubr.bf16.mxu0 0
      %1897 = vmatmul.mubr.bf16.gmra.mrb[0].mxu0 %v1663
      %v1898 = vpop.f32.mrb[0].mxu0
      %v1899 = vadd.f32 %v1702, %v1898
      %v1900 = vpop.f32.mrb[0].mxu0
      %v1901 = vpop.f32.mrb[0].mxu0
      %v1902 = vadd.f32 %v1702, %v1901
      %v1903 = vpop.f32.mrb[0].mxu0
      %1904 = vmatprep.mubr.bf16.mxu0 0
      %1905 = vmatmul.mubr.bf16.gmra.mrb[0].mxu0 %v1664
      %v1906 = vpop.f32.mrb[0].mxu0
      %v1907 = vadd.f32 %v1702, %v1906
      %v1908 = vpop.f32.mrb[0].mxu0
      %v1909 = vpop.f32.mrb[0].mxu0
      %v1910 = vadd.f32 %v1702, %v1909
      %v1911 = vpop.f32.mrb[0].mxu0
      %1912 = vmatprep.mubr.bf16.mxu0 0
      %1913 = vmatmul.mubr.bf16.gmra.mrb[0].mxu0 %v1665
      %v1914 = vpop.f32.mrb[0].mxu0
      %v1915 = vadd.f32 %v1702, %v1914
      %v1916 = vpop.f32.mrb[0].mxu0
      %v1917 = vpop.f32.mrb[0].mxu0
      %v1918 = vadd.f32 %v1702, %v1917
      %v1919 = vpop.f32.mrb[0].mxu0
      %1920 = vmatprep.mubr.bf16.mxu0 0
      %1921 = vmatmul.mubr.bf16.gmra.mrb[0].mxu0 %v1666
      %v1922 = vpop.f32.mrb[0].mxu0
      %v1923 = vadd.f32 %v1702, %v1922
      %v1924 = vpop.f32.mrb[0].mxu0
      %v1925 = vpop.f32.mrb[0].mxu0
      %v1926 = vadd.f32 %v1702, %v1925
      %v1927 = vpop.f32.mrb[0].mxu0
      %1928 = vmatprep.mubr.bf16.mxu0 0
      %1929 = vmatmul.mubr.bf16.gmra.mrb[0].mxu0 %v1667
      %v1930 = vpop.f32.mrb[0].mxu0
      %v1931 = vadd.f32 %v1702, %v1930
      %v1932 = vpop.f32.mrb[0].mxu0
      %v1933 = vpop.f32.mrb[0].mxu0
      %v1934 = vadd.f32 %v1702, %v1933
      %v1935 = vpop.f32.mrb[0].mxu0
      %1936 = vmatprep.mubr.bf16.mxu0 0
      %1937 = vmatmul.mubr.bf16.gmra.mrb[0].mxu0 %v1668
      %v1938 = vpop.f32.mrb[0].mxu0
      %v1939 = vadd.f32 %v1702, %v1938
      %v1940 = vpop.f32.mrb[0].mxu0
      %v1941 = vpop.f32.mrb[0].mxu0
      %v1942 = vadd.f32 %v1702, %v1941
      %v1943 = vpop.f32.mrb[0].mxu0
      %1944 = vmatprep.mubr.bf16.mxu0 0
      %1945 = vmatmul.mubr.bf16.gmra.mrb[0].mxu0 %v1669
      %v1946 = vpop.f32.mrb[0].mxu0
      %v1947 = vadd.f32 %v1702, %v1946
      %v1948 = vpop.f32.mrb[0].mxu0
      %v1949 = vpop.f32.mrb[0].mxu0
      %v1950 = vadd.f32 %v1702, %v1949
      %v1951 = vpop.f32.mrb[0].mxu0
      %1952 = vmatprep.mubr.bf16.mxu0 0
      %1953 = vmatmul.mubr.bf16.gmra.mrb[0].mxu0 %v1670
      %v1954 = vpop.f32.mrb[0].mxu0
      %v1955 = vadd.f32 %v1702, %v1954
      %v1956 = vpop.f32.mrb[0].mxu0
      %v1957 = vpop.f32.mrb[0].mxu0
      %v1958 = vadd.f32 %v1702, %v1957
      %v1959 = vpop.f32.mrb[0].mxu0
      %1960 = vmatprep.mubr.bf16.mxu0 0
      %1961 = vmatmul.mubr.bf16.gmra.mrb[0].mxu0 %v1671
      %v1962 = vpop.f32.mrb[0].mxu0
      %v1963 = vadd.f32 %v1702, %v1962
      %v1964 = vpop.f32.mrb[0].mxu0
      %v1965 = vpop.f32.mrb[0].mxu0
      %v1966 = vadd.f32 %v1702, %v1965
      %v1967 = vpop.f32.mrb[0].mxu0
      %1968 = vmatprep.mubr.bf16.mxu0 0
      %1969 = vmatmul.mubr.bf16.gmra.mrb[0].mxu0 %v1672
      %v1970 = vpop.f32.mrb[0].mxu0
      %v1971 = vadd.f32 %v1702, %v1970
      %v1972 = vpop.f32.mrb[0].mxu0
      %v1973 = vpop.f32.mrb[0].mxu0
      %v1974 = vadd.f32 %v1702, %v1973
      %v1975 = vpop.f32.mrb[0].mxu0
      %1976 = vmatprep.mubr.bf16.mxu0 0
      %1977 = vmatmul.mubr.bf16.gmra.mrb[0].mxu0 %v1673
      %v1978 = vpop.f32.mrb[0].mxu0
      %v1979 = vadd.f32 %v1702, %v1978
      %v1980 = vpop.f32.mrb[0].mxu0
      %v1981 = vpop.f32.mrb[0].mxu0
      %v1982 = vadd.f32 %v1702, %v1981
      %v1983 = vpop.f32.mrb[0].mxu0
      %1984 = vmatprep.mubr.bf16.mxu0 0
      %1985 = vmatmul.mubr.bf16.gmra.mrb[0].mxu0 %v1674
      %v1986 = vpop.f32.mrb[0].mxu0
      %v1987 = vadd.f32 %v1702, %v1986
      %v1988 = vpop.f32.mrb[0].mxu0
      %v1989 = vpop.f32.mrb[0].mxu0
      %v1990 = vadd.f32 %v1702, %v1989
      %v1991 = vpop.f32.mrb[0].mxu0
      %1992 = vmatprep.mubr.bf16.mxu0 0
      %1993 = vmatmul.mubr.bf16.gmra.mrb[0].mxu0 %v1675
      %v1994 = vpop.f32.mrb[0].mxu0
      %v1995 = vadd.f32 %v1702, %v1994
      %v1996 = vpop.f32.mrb[0].mxu0
      %v1997 = vpop.f32.mrb[0].mxu0
      %v1998 = vadd.f32 %v1702, %v1997
      %v1999 = vpop.f32.mrb[0].mxu0
      %2000 = vmatprep.mubr.bf16.mxu0 0
      %2001 = vmatmul.mubr.bf16.gmra.mrb[0].mxu0 %v1676
      %v2002 = vpop.f32.mrb[0].mxu0
      %v2003 = vadd.f32 %v1702, %v2002
      %v2004 = vpop.f32.mrb[0].mxu0
      %v2005 = vpop.f32.mrb[0].mxu0
      %v2006 = vadd.f32 %v1702, %v2005
      %v2007 = vpop.f32.mrb[0].mxu0
      %2008 = vmatprep.mubr.bf16.mxu0 0
      %2009 = vmatmul.mubr.bf16.gmra.mrb[0].mxu0 %v1677
      %v2010 = vpop.f32.mrb[0].mxu0
      %v2011 = vadd.f32 %v1702, %v2010
      %v2012 = vpop.f32.mrb[0].mxu0
      %v2013 = vpop.f32.mrb[0].mxu0
      %v2014 = vadd.f32 %v1702, %v2013
      %v2015 = vpop.f32.mrb[0].mxu0
      %2016 = vmatprep.mubr.bf16.mxu0 0
      %2017 = vmatmul.mubr.bf16.gmra.mrb[0].mxu0 %v1678
      %v2018 = vpop.f32.mrb[0].mxu0
      %v2019 = vadd.f32 %v1702, %v2018
      %v2020 = vpop.f32.mrb[0].mxu0
      %v2021 = vpop.f32.mrb[0].mxu0
      %v2022 = vadd.f32 %v1702, %v2021
      %v2023 = vpop.f32.mrb[0].mxu0
      %2024 = vmatprep.mubr.bf16.mxu0 0
      %2025 = vmatmul.mubr.bf16.gmra.mrb[0].mxu0 %v1679
      %v2026 = vpop.f32.mrb[0].mxu0
      %v2027 = vadd.f32 %v1702, %v2026
      %v2028 = vpop.f32.mrb[0].mxu0
      %v2029 = vpop.f32.mrb[0].mxu0
      %v2030 = vadd.f32 %v1702, %v2029
      %v2031 = vpop.f32.mrb[0].mxu0
      %2032 = vmatprep.mubr.bf16.mxu0 0
      %2033 = vmatmul.mubr.bf16.gmra.mrb[0].mxu0 %v1680
      %v2034 = vpop.f32.mrb[0].mxu0
      %v2035 = vadd.f32 %v1702, %v2034
      %v2036 = vpop.f32.mrb[0].mxu0
      %v2037 = vpop.f32.mrb[0].mxu0
      %v2038 = vadd.f32 %v1702, %v2037
      %v2039 = vpop.f32.mrb[0].mxu0
      %2040 = vdwg.mxu0
      %v2041 = vmax.f32 %v1787, 0.0
      %v2042 = vmax.f32 %v1790, 0.0
      %v2043 = vmax.f32 %v1795, 0.0
      %v2044 = vmax.f32 %v1798, 0.0
      %v2045 = vmax.f32 %v1803, 0.0
      %v2046 = vmax.f32 %v1806, 0.0
      %v2047 = vmax.f32 %v1811, 0.0
      %v2048 = vmax.f32 %v1814, 0.0
      %v2049 = vmax.f32 %v1819, 0.0
      %v2050 = vmax.f32 %v1822, 0.0
      %v2051 = vmax.f32 %v1827, 0.0
      %v2052 = vmax.f32 %v1830, 0.0
      %v2053 = vmax.f32 %v1835, 0.0
      %v2054 = vmax.f32 %v1838, 0.0
      %v2055 = vmax.f32 %v1843, 0.0
      %v2056 = vmax.f32 %v1846, 0.0
      %v2057 = vmax.f32 %v1851, 0.0
      %v2058 = vmax.f32 %v1854, 0.0
      %v2059 = vmax.f32 %v1859, 0.0
      %v2060 = vmax.f32 %v1862, 0.0
      %v2061 = vmax.f32 %v1867, 0.0
      %v2062 = vmax.f32 %v1870, 0.0
      %v2063 = vmax.f32 %v1875, 0.0
      %v2064 = vmax.f32 %v1878, 0.0
      %v2065 = vmax.f32 %v1883, 0.0
      %v2066 = vmax.f32 %v1886, 0.0
      %v2067 = vmax.f32 %v1891, 0.0
      %v2068 = vmax.f32 %v1894, 0.0
      %v2069 = vmax.f32 %v1899, 0.0
      %v2070 = vmax.f32 %v1902, 0.0
      %v2071 = vmax.f32 %v1907, 0.0
      %v2072 = vmax.f32 %v1910, 0.0
      %v2073 = vmax.f32 %v1915, 0.0
      %v2074 = vmax.f32 %v1918, 0.0
      %v2075 = vmax.f32 %v1923, 0.0
      %v2076 = vmax.f32 %v1926, 0.0
      %v2077 = vmax.f32 %v1931, 0.0
      %v2078 = vmax.f32 %v1934, 0.0
      %v2079 = vmax.f32 %v1939, 0.0
      %v2080 = vmax.f32 %v1942, 0.0
      %v2081 = vmax.f32 %v1947, 0.0
      %v2082 = vmax.f32 %v1950, 0.0
      %v2083 = vmax.f32 %v1955, 0.0
      %v2084 = vmax.f32 %v1958, 0.0
      %v2085 = vmax.f32 %v1963, 0.0
      %v2086 = vmax.f32 %v1966, 0.0
      %v2087 = vmax.f32 %v1971, 0.0
      %v2088 = vmax.f32 %v1974, 0.0
      %v2089 = vmax.f32 %v1979, 0.0
      %v2090 = vmax.f32 %v1982, 0.0
      %v2091 = vmax.f32 %v1987, 0.0
      %v2092 = vmax.f32 %v1990, 0.0
      %v2093 = vmax.f32 %v1995, 0.0
      %v2094 = vmax.f32 %v1998, 0.0
      %v2095 = vmax.f32 %v2003, 0.0
      %v2096 = vmax.f32 %v2006, 0.0
      %v2097 = vmax.f32 %v2011, 0.0
      %v2098 = vmax.f32 %v2014, 0.0
      %v2099 = vmax.f32 %v2019, 0.0
      %v2100 = vmax.f32 %v2022, 0.0
      %v2101 = vmax.f32 %v2027, 0.0
      %v2102 = vmax.f32 %v2030, 0.0
      %v2103 = vmax.f32 %v2035, 0.0
      %v2104 = vmax.f32 %v2038, 0.0
      %v2105 = vld [vmem:[%s5] sm:$0x1]
      %v2107 = vlaneseq
      %v2108 = vshrl.u32 %v2107, 7
      %v2109 = vsub.s32 0, %v2108
      %v2110 = vrot.slane %v2105, %v2109
      %v2112 = vmul.f32 %v2041, %v2110
      %v2113 = vmul.f32 %v2042, %v2110
      %v2114 = vmul.f32 %v2043, %v2110
      %v2115 = vmul.f32 %v2044, %v2110
      %v2116 = vmul.f32 %v2045, %v2110
      %v2117 = vmul.f32 %v2046, %v2110
      %v2118 = vmul.f32 %v2047, %v2110
      %v2119 = vmul.f32 %v2048, %v2110
      %v2120 = vmul.f32 %v2049, %v2110
      %v2121 = vmul.f32 %v2050, %v2110
      %v2122 = vmul.f32 %v2051, %v2110
      %v2123 = vmul.f32 %v2052, %v2110
      %v2124 = vmul.f32 %v2053, %v2110
      %v2125 = vmul.f32 %v2054, %v2110
      %v2126 = vmul.f32 %v2055, %v2110
      %v2127 = vmul.f32 %v2056, %v2110
      %v2128 = vmul.f32 %v2057, %v2110
      %v2129 = vmul.f32 %v2058, %v2110
      %v2130 = vmul.f32 %v2059, %v2110
      %v2131 = vmul.f32 %v2060, %v2110
      %v2132 = vmul.f32 %v2061, %v2110
      %v2133 = vmul.f32 %v2062, %v2110
      %v2134 = vmul.f32 %v2063, %v2110
      %v2135 = vmul.f32 %v2064, %v2110
      %v2136 = vmul.f32 %v2065, %v2110
      %v2137 = vmul.f32 %v2066, %v2110
      %v2138 = vmul.f32 %v2067, %v2110
      %v2139 = vmul.f32 %v2068, %v2110
      %v2140 = vmul.f32 %v2069, %v2110
      %v2141 = vmul.f32 %v2070, %v2110
      %v2142 = vmul.f32 %v2071, %v2110
      %v2143 = vmul.f32 %v2072, %v2110
      %v2144 = vmul.f32 %v2073, %v2110
      %v2145 = vmul.f32 %v2074, %v2110
      %v2146 = vmul.f32 %v2075, %v2110
      %v2147 = vmul.f32 %v2076, %v2110
      %v2148 = vmul.f32 %v2077, %v2110
      %v2149 = vmul.f32 %v2078, %v2110
      %v2150 = vmul.f32 %v2079, %v2110
      %v2151 = vmul.f32 %v2080, %v2110
      %v2152 = vmul.f32 %v2081, %v2110
      %v2153 = vmul.f32 %v2082, %v2110
      %v2154 = vmul.f32 %v2083, %v2110
      %v2155 = vmul.f32 %v2084, %v2110
      %v2156 = vmul.f32 %v2085, %v2110
      %v2157 = vmul.f32 %v2086, %v2110
      %v2158 = vmul.f32 %v2087, %v2110
      %v2159 = vmul.f32 %v2088, %v2110
      %v2160 = vmul.f32 %v2089, %v2110
      %v2161 = vmul.f32 %v2090, %v2110
      %v2162 = vmul.f32 %v2091, %v2110
      %v2163 = vmul.f32 %v2092, %v2110
      %v2164 = vmul.f32 %v2093, %v2110
      %v2165 = vmul.f32 %v2094, %v2110
      %v2166 = vmul.f32 %v2095, %v2110
      %v2167 = vmul.f32 %v2096, %v2110
      %v2168 = vmul.f32 %v2097, %v2110
      %v2169 = vmul.f32 %v2098, %v2110
      %v2170 = vmul.f32 %v2099, %v2110
      %v2171 = vmul.f32 %v2100, %v2110
      %v2172 = vmul.f32 %v2101, %v2110
      %v2173 = vmul.f32 %v2102, %v2110
      %v2174 = vmul.f32 %v2103, %v2110
      %v2175 = vmul.f32 %v2104, %v2110
      %2176 = vadd.xlane.f32.xlu0 %v2112
      %v2177 = vpop.xlane.xlu0 %2176
      %2178 = vadd.xlane.f32.xlu0 %v2113
      %v2179 = vpop.xlane.xlu0 %2178
      %2180 = vadd.xlane.f32.xlu0 %v2114
      %v2181 = vpop.xlane.xlu0 %2180
      %2182 = vadd.xlane.f32.xlu0 %v2115
      %v2183 = vpop.xlane.xlu0 %2182
      %2184 = vadd.xlane.f32.xlu0 %v2116
      %v2185 = vpop.xlane.xlu0 %2184
      %2186 = vadd.xlane.f32.xlu0 %v2117
      %v2187 = vpop.xlane.xlu0 %2186
      %2188 = vadd.xlane.f32.xlu0 %v2118
      %v2189 = vpop.xlane.xlu0 %2188
      %2190 = vadd.xlane.f32.xlu0 %v2119
      %v2191 = vpop.xlane.xlu0 %2190
      %2192 = vadd.xlane.f32.xlu0 %v2120
      %v2193 = vpop.xlane.xlu0 %2192
      %2194 = vadd.xlane.f32.xlu0 %v2121
      %v2195 = vpop.xlane.xlu0 %2194
      %2196 = vadd.xlane.f32.xlu0 %v2122
      %v2197 = vpop.xlane.xlu0 %2196
      %2198 = vadd.xlane.f32.xlu0 %v2123
      %v2199 = vpop.xlane.xlu0 %2198
      %2200 = vadd.xlane.f32.xlu0 %v2124
      %v2201 = vpop.xlane.xlu0 %2200
      %2202 = vadd.xlane.f32.xlu0 %v2125
      %v2203 = vpop.xlane.xlu0 %2202
      %2204 = vadd.xlane.f32.xlu0 %v2126
      %v2205 = vpop.xlane.xlu0 %2204
      %2206 = vadd.xlane.f32.xlu0 %v2127
      %v2207 = vpop.xlane.xlu0 %2206
      %2208 = vadd.xlane.f32.xlu0 %v2128
      %v2209 = vpop.xlane.xlu0 %2208
      %2210 = vadd.xlane.f32.xlu0 %v2129
      %v2211 = vpop.xlane.xlu0 %2210
      %2212 = vadd.xlane.f32.xlu0 %v2130
      %v2213 = vpop.xlane.xlu0 %2212
      %2214 = vadd.xlane.f32.xlu0 %v2131
      %v2215 = vpop.xlane.xlu0 %2214
      %2216 = vadd.xlane.f32.xlu0 %v2132
      %v2217 = vpop.xlane.xlu0 %2216
      %2218 = vadd.xlane.f32.xlu0 %v2133
      %v2219 = vpop.xlane.xlu0 %2218
      %2220 = vadd.xlane.f32.xlu0 %v2134
      %v2221 = vpop.xlane.xlu0 %2220
      %2222 = vadd.xlane.f32.xlu0 %v2135
      %v2223 = vpop.xlane.xlu0 %2222
      %2224 = vadd.xlane.f32.xlu0 %v2136
      %v2225 = vpop.xlane.xlu0 %2224
      %2226 = vadd.xlane.f32.xlu0 %v2137
      %v2227 = vpop.xlane.xlu0 %2226
      %2228 = vadd.xlane.f32.xlu0 %v2138
      %v2229 = vpop.xlane.xlu0 %2228
      %2230 = vadd.xlane.f32.xlu0 %v2139
      %v2231 = vpop.xlane.xlu0 %2230
      %2232 = vadd.xlane.f32.xlu0 %v2140
      %v2233 = vpop.xlane.xlu0 %2232
      %2234 = vadd.xlane.f32.xlu0 %v2141
      %v2235 = vpop.xlane.xlu0 %2234
      %2236 = vadd.xlane.f32.xlu0 %v2142
      %v2237 = vpop.xlane.xlu0 %2236
      %2238 = vadd.xlane.f32.xlu0 %v2143
      %v2239 = vpop.xlane.xlu0 %2238
      %2240 = vadd.xlane.f32.xlu0 %v2144
      %v2241 = vpop.xlane.xlu0 %2240
      %2242 = vadd.xlane.f32.xlu0 %v2145
      %v2243 = vpop.xlane.xlu0 %2242
      %2244 = vadd.xlane.f32.xlu0 %v2146
      %v2245 = vpop.xlane.xlu0 %2244
      %2246 = vadd.xlane.f32.xlu0 %v2147
      %v2247 = vpop.xlane.xlu0 %2246
      %2248 = vadd.xlane.f32.xlu0 %v2148
      %v2249 = vpop.xlane.xlu0 %2248
      %2250 = vadd.xlane.f32.xlu0 %v2149
      %v2251 = vpop.xlane.xlu0 %2250
      %2252 = vadd.xlane.f32.xlu0 %v2150
      %v2253 = vpop.xlane.xlu0 %2252
      %2254 = vadd.xlane.f32.xlu0 %v2151
      %v2255 = vpop.xlane.xlu0 %2254
      %2256 = vadd.xlane.f32.xlu0 %v2152
      %v2257 = vpop.xlane.xlu0 %2256
      %2258 = vadd.xlane.f32.xlu0 %v2153
      %v2259 = vpop.xlane.xlu0 %2258
      %2260 = vadd.xlane.f32.xlu0 %v2154
      %v2261 = vpop.xlane.xlu0 %2260
      %2262 = vadd.xlane.f32.xlu0 %v2155
      %v2263 = vpop.xlane.xlu0 %2262
      %2264 = vadd.xlane.f32.xlu0 %v2156
      %v2265 = vpop.xlane.xlu0 %2264
      %2266 = vadd.xlane.f32.xlu0 %v2157
      %v2267 = vpop.xlane.xlu0 %2266
      %2268 = vadd.xlane.f32.xlu0 %v2158
      %v2269 = vpop.xlane.xlu0 %2268
      %2270 = vadd.xlane.f32.xlu0 %v2159
      %v2271 = vpop.xlane.xlu0 %2270
      %2272 = vadd.xlane.f32.xlu0 %v2160
      %v2273 = vpop.xlane.xlu0 %2272
      %2274 = vadd.xlane.f32.xlu0 %v2161
      %v2275 = vpop.xlane.xlu0 %2274
      %2276 = vadd.xlane.f32.xlu0 %v2162
      %v2277 = vpop.xlane.xlu0 %2276
      %2278 = vadd.xlane.f32.xlu0 %v2163
      %v2279 = vpop.xlane.xlu0 %2278
      %2280 = vadd.xlane.f32.xlu0 %v2164
      %v2281 = vpop.xlane.xlu0 %2280
      %2282 = vadd.xlane.f32.xlu0 %v2165
      %v2283 = vpop.xlane.xlu0 %2282
      %2284 = vadd.xlane.f32.xlu0 %v2166
      %v2285 = vpop.xlane.xlu0 %2284
      %2286 = vadd.xlane.f32.xlu0 %v2167
      %v2287 = vpop.xlane.xlu0 %2286
      %2288 = vadd.xlane.f32.xlu0 %v2168
      %v2289 = vpop.xlane.xlu0 %2288
      %2290 = vadd.xlane.f32.xlu0 %v2169
      %v2291 = vpop.xlane.xlu0 %2290
      %2292 = vadd.xlane.f32.xlu0 %v2170
      %v2293 = vpop.xlane.xlu0 %2292
      %2294 = vadd.xlane.f32.xlu0 %v2171
      %v2295 = vpop.xlane.xlu0 %2294
      %2296 = vadd.xlane.f32.xlu0 %v2172
      %v2297 = vpop.xlane.xlu0 %2296
      %2298 = vadd.xlane.f32.xlu0 %v2173
      %v2299 = vpop.xlane.xlu0 %2298
      %2300 = vadd.xlane.f32.xlu0 %v2174
      %v2301 = vpop.xlane.xlu0 %2300
      %2302 = vadd.xlane.f32.xlu0 %v2175
      %v2303 = vpop.xlane.xlu0 %2302
      %v2304 = vld [vmem:[#allocation2] sm:$0x1]
      %v2306 = vlaneseq
      %v2307 = vshrl.u32 %v2306, 7
      %v2308 = vsub.s32 0, %v2307
      %v2309 = vrot.slane %v2304, %v2308
      %v2311 = vadd.f32 %v2177, %v2309
      %v2312 = vadd.f32 %v2179, %v2309
      %v2313 = vadd.f32 %v2181, %v2309
      %v2314 = vadd.f32 %v2183, %v2309
      %v2315 = vadd.f32 %v2185, %v2309
      %v2316 = vadd.f32 %v2187, %v2309
      %v2317 = vadd.f32 %v2189, %v2309
      %v2318 = vadd.f32 %v2191, %v2309
      %v2319 = vadd.f32 %v2193, %v2309
      %v2320 = vadd.f32 %v2195, %v2309
      %v2321 = vadd.f32 %v2197, %v2309
      %v2322 = vadd.f32 %v2199, %v2309
      %v2323 = vadd.f32 %v2201, %v2309
      %v2324 = vadd.f32 %v2203, %v2309
      %v2325 = vadd.f32 %v2205, %v2309
      %v2326 = vadd.f32 %v2207, %v2309
      %v2327 = vadd.f32 %v2209, %v2309
      %v2328 = vadd.f32 %v2211, %v2309
      %v2329 = vadd.f32 %v2213, %v2309
      %v2330 = vadd.f32 %v2215, %v2309
      %v2331 = vadd.f32 %v2217, %v2309
      %v2332 = vadd.f32 %v2219, %v2309
      %v2333 = vadd.f32 %v2221, %v2309
      %v2334 = vadd.f32 %v2223, %v2309
      %v2335 = vadd.f32 %v2225, %v2309
      %v2336 = vadd.f32 %v2227, %v2309
      %v2337 = vadd.f32 %v2229, %v2309
      %v2338 = vadd.f32 %v2231, %v2309
      %v2339 = vadd.f32 %v2233, %v2309
      %v2340 = vadd.f32 %v2235, %v2309
      %v2341 = vadd.f32 %v2237, %v2309
      %v2342 = vadd.f32 %v2239, %v2309
      %v2343 = vadd.f32 %v2241, %v2309
      %v2344 = vadd.f32 %v2243, %v2309
      %v2345 = vadd.f32 %v2245, %v2309
      %v2346 = vadd.f32 %v2247, %v2309
      %v2347 = vadd.f32 %v2249, %v2309
      %v2348 = vadd.f32 %v2251, %v2309
      %v2349 = vadd.f32 %v2253, %v2309
      %v2350 = vadd.f32 %v2255, %v2309
      %v2351 = vadd.f32 %v2257, %v2309
      %v2352 = vadd.f32 %v2259, %v2309
      %v2353 = vadd.f32 %v2261, %v2309
      %v2354 = vadd.f32 %v2263, %v2309
      %v2355 = vadd.f32 %v2265, %v2309
      %v2356 = vadd.f32 %v2267, %v2309
      %v2357 = vadd.f32 %v2269, %v2309
      %v2358 = vadd.f32 %v2271, %v2309
      %v2359 = vadd.f32 %v2273, %v2309
      %v2360 = vadd.f32 %v2275, %v2309
      %v2361 = vadd.f32 %v2277, %v2309
      %v2362 = vadd.f32 %v2279, %v2309
      %v2363 = vadd.f32 %v2281, %v2309
      %v2364 = vadd.f32 %v2283, %v2309
      %v2365 = vadd.f32 %v2285, %v2309
      %v2366 = vadd.f32 %v2287, %v2309
      %v2367 = vadd.f32 %v2289, %v2309
      %v2368 = vadd.f32 %v2291, %v2309
      %v2369 = vadd.f32 %v2293, %v2309
      %v2370 = vadd.f32 %v2295, %v2309
      %v2371 = vadd.f32 %v2297, %v2309
      %v2372 = vadd.f32 %v2299, %v2309
      %v2373 = vadd.f32 %v2301, %v2309
      %v2374 = vadd.f32 %v2303, %v2309
      %v2375 = vtanh.pop %v2311
      %v2376 = vtanh.pop %v2312
      %v2377 = vtanh.pop %v2313
      %v2378 = vtanh.pop %v2314
      %v2379 = vtanh.pop %v2315
      %v2380 = vtanh.pop %v2316
      %v2381 = vtanh.pop %v2317
      %v2382 = vtanh.pop %v2318
      %v2383 = vtanh.pop %v2319
      %v2384 = vtanh.pop %v2320
      %v2385 = vtanh.pop %v2321
      %v2386 = vtanh.pop %v2322
      %v2387 = vtanh.pop %v2323
      %v2388 = vtanh.pop %v2324
      %v2389 = vtanh.pop %v2325
      %v2390 = vtanh.pop %v2326
      %v2391 = vtanh.pop %v2327
      %v2392 = vtanh.pop %v2328
      %v2393 = vtanh.pop %v2329
      %v2394 = vtanh.pop %v2330
      %v2395 = vtanh.pop %v2331
      %v2396 = vtanh.pop %v2332
      %v2397 = vtanh.pop %v2333
      %v2398 = vtanh.pop %v2334
      %v2399 = vtanh.pop %v2335
      %v2400 = vtanh.pop %v2336
      %v2401 = vtanh.pop %v2337
      %v2402 = vtanh.pop %v2338
      %v2403 = vtanh.pop %v2339
      %v2404 = vtanh.pop %v2340
      %v2405 = vtanh.pop %v2341
      %v2406 = vtanh.pop %v2342
      %v2407 = vtanh.pop %v2343
      %v2408 = vtanh.pop %v2344
      %v2409 = vtanh.pop %v2345
      %v2410 = vtanh.pop %v2346
      %v2411 = vtanh.pop %v2347
      %v2412 = vtanh.pop %v2348
      %v2413 = vtanh.pop %v2349
      %v2414 = vtanh.pop %v2350
      %v2415 = vtanh.pop %v2351
      %v2416 = vtanh.pop %v2352
      %v2417 = vtanh.pop %v2353
      %v2418 = vtanh.pop %v2354
      %v2419 = vtanh.pop %v2355
      %v2420 = vtanh.pop %v2356
      %v2421 = vtanh.pop %v2357
      %v2422 = vtanh.pop %v2358
      %v2423 = vtanh.pop %v2359
      %v2424 = vtanh.pop %v2360
      %v2425 = vtanh.pop %v2361
      %v2426 = vtanh.pop %v2362
      %v2427 = vtanh.pop %v2363
      %v2428 = vtanh.pop %v2364
      %v2429 = vtanh.pop %v2365
      %v2430 = vtanh.pop %v2366
      %v2431 = vtanh.pop %v2367
      %v2432 = vtanh.pop %v2368
      %v2433 = vtanh.pop %v2369
      %v2434 = vtanh.pop %v2370
      %v2435 = vtanh.pop %v2371
      %v2436 = vtanh.pop %v2372
      %v2437 = vtanh.pop %v2373
      %v2438 = vtanh.pop %v2374
      %vm2439 = vcmask 7168
      %2440 = vst.msk [vmem:[%s282] sm:$0xff] %vm2439, %v2375
      %2441 = vst.msk [vmem:[%s282 + $0x8] sm:$0xff] %vm2439, %v2376
      %2442 = vst.msk [vmem:[%s282 + $0x10] sm:$0xff] %vm2439, %v2377
      %2443 = vst.msk [vmem:[%s282 + $0x18] sm:$0xff] %vm2439, %v2378
      %2444 = vst.msk [vmem:[%s282 + $0x20] sm:$0xff] %vm2439, %v2379
      %2445 = vst.msk [vmem:[%s282 + $0x28] sm:$0xff] %vm2439, %v2380
      %2446 = vst.msk [vmem:[%s282 + $0x30] sm:$0xff] %vm2439, %v2381
      %2447 = vst.msk [vmem:[%s282 + $0x38] sm:$0xff] %vm2439, %v2382
      %2448 = vst.msk [vmem:[%s282 + $0x40] sm:$0xff] %vm2439, %v2383
      %2449 = vst.msk [vmem:[%s282 + $0x48] sm:$0xff] %vm2439, %v2384
      %2450 = vst.msk [vmem:[%s282 + $0x50] sm:$0xff] %vm2439, %v2385
      %2451 = vst.msk [vmem:[%s282 + $0x58] sm:$0xff] %vm2439, %v2386
      %2452 = vst.msk [vmem:[%s282 + $0x60] sm:$0xff] %vm2439, %v2387
      %2453 = vst.msk [vmem:[%s282 + $0x68] sm:$0xff] %vm2439, %v2388
      %2454 = vst.msk [vmem:[%s282 + $0x70] sm:$0xff] %vm2439, %v2389
      %2455 = vst.msk [vmem:[%s282 + $0x78] sm:$0xff] %vm2439, %v2390
      %2456 = vst.msk [vmem:[%s282 + $0x80] sm:$0xff] %vm2439, %v2391
      %2457 = vst.msk [vmem:[%s282 + $0x88] sm:$0xff] %vm2439, %v2392
      %2458 = vst.msk [vmem:[%s282 + $0x90] sm:$0xff] %vm2439, %v2393
      %2459 = vst.msk [vmem:[%s282 + $0x98] sm:$0xff] %vm2439, %v2394
      %2460 = vst.msk [vmem:[%s282 + $0xa0] sm:$0xff] %vm2439, %v2395
      %2461 = vst.msk [vmem:[%s282 + $0xa8] sm:$0xff] %vm2439, %v2396
      %2462 = vst.msk [vmem:[%s282 + $0xb0] sm:$0xff] %vm2439, %v2397
      %2463 = vst.msk [vmem:[%s282 + $0xb8] sm:$0xff] %vm2439, %v2398
      %2464 = vst.msk [vmem:[%s282 + $0xc0] sm:$0xff] %vm2439, %v2399
      %2465 = vst.msk [vmem:[%s282 + $0xc8] sm:$0xff] %vm2439, %v2400
      %2466 = vst.msk [vmem:[%s282 + $0xd0] sm:$0xff] %vm2439, %v2401
      %2467 = vst.msk [vmem:[%s282 + $0xd8] sm:$0xff] %vm2439, %v2402
      %2468 = vst.msk [vmem:[%s282 + $0xe0] sm:$0xff] %vm2439, %v2403
      %2469 = vst.msk [vmem:[%s282 + $0xe8] sm:$0xff] %vm2439, %v2404
      %2470 = vst.msk [vmem:[%s282 + $0xf0] sm:$0xff] %vm2439, %v2405
      %2471 = vst.msk [vmem:[%s282 + $0xf8] sm:$0xff] %vm2439, %v2406
      %2472 = vst.msk [vmem:[%s282 + $0x100] sm:$0xff] %vm2439, %v2407
      %2473 = vst.msk [vmem:[%s282 + $0x108] sm:$0xff] %vm2439, %v2408
      %2474 = vst.msk [vmem:[%s282 + $0x110] sm:$0xff] %vm2439, %v2409
      %2475 = vst.msk [vmem:[%s282 + $0x118] sm:$0xff] %vm2439, %v2410
      %2476 = vst.msk [vmem:[%s282 + $0x120] sm:$0xff] %vm2439, %v2411
      %2477 = vst.msk [vmem:[%s282 + $0x128] sm:$0xff] %vm2439, %v2412
      %2478 = vst.msk [vmem:[%s282 + $0x130] sm:$0xff] %vm2439, %v2413
      %2479 = vst.msk [vmem:[%s282 + $0x138] sm:$0xff] %vm2439, %v2414
      %2480 = vst.msk [vmem:[%s282 + $0x140] sm:$0xff] %vm2439, %v2415
      %2481 = vst.msk [vmem:[%s282 + $0x148] sm:$0xff] %vm2439, %v2416
      %2482 = vst.msk [vmem:[%s282 + $0x150] sm:$0xff] %vm2439, %v2417
      %2483 = vst.msk [vmem:[%s282 + $0x158] sm:$0xff] %vm2439, %v2418
      %2484 = vst.msk [vmem:[%s282 + $0x160] sm:$0xff] %vm2439, %v2419
      %2485 = vst.msk [vmem:[%s282 + $0x168] sm:$0xff] %vm2439, %v2420
      %2486 = vst.msk [vmem:[%s282 + $0x170] sm:$0xff] %vm2439, %v2421
      %2487 = vst.msk [vmem:[%s282 + $0x178] sm:$0xff] %vm2439, %v2422
      %2488 = vst.msk [vmem:[%s282 + $0x180] sm:$0xff] %vm2439, %v2423
      %2489 = vst.msk [vmem:[%s282 + $0x188] sm:$0xff] %vm2439, %v2424
      %2490 = vst.msk [vmem:[%s282 + $0x190] sm:$0xff] %vm2439, %v2425
      %2491 = vst.msk [vmem:[%s282 + $0x198] sm:$0xff] %vm2439, %v2426
      %2492 = vst.msk [vmem:[%s282 + $0x1a0] sm:$0xff] %vm2439, %v2427
      %2493 = vst.msk [vmem:[%s282 + $0x1a8] sm:$0xff] %vm2439, %v2428
      %2494 = vst.msk [vmem:[%s282 + $0x1b0] sm:$0xff] %vm2439, %v2429
      %2495 = vst.msk [vmem:[%s282 + $0x1b8] sm:$0xff] %vm2439, %v2430
      %2496 = vst.msk [vmem:[%s282 + $0x1c0] sm:$0xff] %vm2439, %v2431
      %2497 = vst.msk [vmem:[%s282 + $0x1c8] sm:$0xff] %vm2439, %v2432
      %2498 = vst.msk [vmem:[%s282 + $0x1d0] sm:$0xff] %vm2439, %v2433
      %2499 = vst.msk [vmem:[%s282 + $0x1d8] sm:$0xff] %vm2439, %v2434
      %2500 = vst.msk [vmem:[%s282 + $0x1e0] sm:$0xff] %vm2439, %v2435
      %2501 = vst.msk [vmem:[%s282 + $0x1e8] sm:$0xff] %vm2439, %v2436
      %2502 = vst.msk [vmem:[%s282 + $0x1f0] sm:$0xff] %vm2439, %v2437
      %2503 = vst.msk [vmem:[%s282 + $0x1f8] sm:$0xff] %vm2439, %v2438
      %s2504 = smul.u32 64, %s20
      %p2505 = scmp.lt.s32.totalorder %s2504, 127
      %s2506 = scalar_select %p2505, %s2504, 127
      %s2507 = smul.addr %s2506, 8
      %s2508 = scalar_lea.vmem %s7, %s2507
      // Predicated region
      $region49: #{policy_forward.1} parent=47 // pred_check
        %p2509 = pneg %p190
      $region50: #{policy_forward.1} parent=47 // pred_check_branch
        %2511 = sbr.rel (%p2509) target = $region52
      $region51: #{policy_forward.1} parent=47 // pred_region
        %s2512 = smul.u32 64, %s20
      $region52: #{policy_forward.1} parent=47 // pred_fallthru
        _
    $region48: #{policy_forward.1} parent=5 // pred_fallthru
      _
    %p2513 = scmp.le.s32.totalorder 2, %s15
    // Predicated region
    $region53: #{policy_forward.1} parent=5 // pred_check
      %p2514 = pneg %p2513
    $region54: #{policy_forward.1} parent=5 // pred_check_branch
      %2516 = sbr.rel (%p2514) target = $region56
    $region55: #{policy_forward.1} parent=5 // pred_region
      %s2517 = ssub.s32 %s15, 2
      // Predicated region
      $region57: #{policy_forward.1} parent=55 // pred_check
        %p2518 = pneg %p196
      $region58: #{policy_forward.1} parent=55 // pred_check_branch
        %2520 = sbr.rel (%p2518) target = $region60
      $region59: #{policy_forward.1} parent=55 // pred_region
        %s2521 = smul.u32 64, %s21
        %p2522 = scmp.lt.s32.totalorder %s2521, 127
        %s2523 = scalar_select %p2522, %s2521, 127
        %s2524 = smul.addr %s2523, 8
        %s2525 = scalar_lea.vmem %s7, %s2524
      $region60: #{policy_forward.1} parent=55 // pred_fallthru
        _
    $region56: #{policy_forward.1} parent=5 // pred_fallthru
      _
  $region6: #{policy_forward.1} parent=0 // loop_footer
    %s19 = sadd.s32 1, %s15
  $region7: #{policy_forward.1} parent=0 // loop_footer_branch
    %14 = sbr.rel target = $region3
  $region8: #{policy_forward.1} parent=0 // loop_exit
    _

</llo_original>
